<compile_context>
chip_gen: v6e
topology: v6e:2x2x1
jax: 0.10.0
libtpu: 0.0.40
codegen_flags: <defaults>
</compile_context>

<pallas_src>
import jax
import jax.numpy as jnp
from jax.experimental import pallas as pl
from jax.experimental.pallas import tpu as pltpu


def _round_up(x, m):
    return (x + m - 1) // m * m


# -----------------------------------------------------------------------------
# Pallas kernel factory: one row-tile (a whole number of images) per grid step.
# -----------------------------------------------------------------------------
def _make_kernel(Ws, C1, C2, Cin, Coutp, tile_rows, has_sc, compute_dtype):
    # Circular-roll shift amounts (positive equivalents of -1 / -Ws).  Rows that
    # wrap around image/tile boundaries are exactly the rows the boundary masks
    # zero out, so the circular wrap never contaminates valid outputs.
    sh_l = 1 % tile_rows                 # out[r] = in[r - 1]   -> pixel (h, w-1)
    sh_r = (tile_rows - 1) % tile_rows   # out[r] = in[r + 1]   -> pixel (h, w+1)
    sh_u = Ws % tile_rows                # out[r] = in[r - Ws]  -> pixel (h-1, w)
    sh_d = (tile_rows - Ws) % tile_rows  # out[r] = in[r + Ws]  -> pixel (h+1, w)

    def kernel(*refs):
        if has_sc:
            (x_ref, w1_ref, w2_ref, w3_ref, w4_ref, w5_ref, wsc_ref,
             b_ref, m_ref, o_ref) = refs
        else:
            (x_ref, w1_ref, w2_ref, w3_ref, w4_ref, w5_ref,
             b_ref, m_ref, o_ref) = refs
            wsc_ref = None

        f32 = jnp.float32
        relu = lambda t: jnp.maximum(t, 0.0)

        def mm(a, w_ref):
            # bf16 MXU matmul with f32 accumulation.
            return jnp.dot(a.astype(compute_dtype), w_ref[...],
                           preferred_element_type=f32)

        def bias(i, c):
            return b_ref[i:i + 1, :c]                    # (1, c) float32

        # Precomputed per-row boundary masks (left/right/up/down), f32 0/1.
        m = m_ref[...]                                   # (T, 8)
        mL, mR, mU, mD = m[:, 0:1], m[:, 1:2], m[:, 2:3], m[:, 3:4]

        x = x_ref[...]                                   # (T, Cin) bf16

        # conv1 (1x1, stride folded in wrapper) + bn1 + relu
        h1 = relu(mm(x, w1_ref) + bias(0, C1))           # (T, C1) f32
        # conv2 (1x1) + bn2 + relu
        h2 = relu(mm(h1, w2_ref) + bias(1, C2))          # (T, C2) f32
        # conv3 (1x3, pad (0,1)) + bn3 + relu: roll + mask, one merged matmul
        h2_l = pltpu.roll(h2, sh_l, axis=0) * mL
        h2_r = pltpu.roll(h2, sh_r, axis=0) * mR
        taps3 = jnp.concatenate([h2_l, h2, h2_r], axis=-1)   # (T, 3*C2)
        h3 = relu(mm(taps3, w3_ref) + bias(2, C1))            # (T, C1)
        # conv4 (3x1, pad (1,0)) + bn4 + relu
        h3_u = pltpu.roll(h3, sh_u, axis=0) * mU
        h3_d = pltpu.roll(h3, sh_d, axis=0) * mD
        taps4 = jnp.concatenate([h3_u, h3, h3_d], axis=-1)    # (T, 3*C1)
        h4 = relu(mm(taps4, w4_ref) + bias(3, C1))             # (T, C1)

        # conv5 (1x1) + bn5, with the shortcut bias already folded into row 4.
        out = mm(h4, w5_ref) + bias(4, Coutp)                  # (T, Coutp)
        if has_sc:
            out = out + mm(x, wsc_ref)                         # projection path
        else:
            # Identity shortcut: no matmul, just add the (zero-padded) input.
            xr = x.astype(f32)
            if Coutp > Cin:
                xr = jnp.concatenate(
                    [xr, jnp.zeros((tile_rows, Coutp - Cin), f32)], axis=-1)
            out = out + xr

        o_ref[...] = relu(out).astype(o_ref.dtype)             # bf16, lane-dense

    return kernel


# -----------------------------------------------------------------------------
# Parameter init (deterministic) + BN folding + kernel-layout packing
# -----------------------------------------------------------------------------
def init_params(key, in_channels, out_channels, stride):
    reduction = 0.5
    if stride == 2:
        reduction = 1.0
    elif in_channels > out_channels:
        reduction = 0.25
    c1 = int(in_channels * reduction)
    c2 = int(in_channels * reduction * 0.5)

    ks = jax.random.split(key, 12)

    def conv_w(k, o, i, kh, kw):
        bound = 1.0 / float(i * kh * kw) ** 0.5
        return jax.random.uniform(k, (o, i, kh, kw), jnp.float32, -bound, bound)

    def bn_p(k, c):
        k1, k2, k3, k4 = jax.random.split(k, 4)
        gamma = jax.random.uniform(k1, (c,), jnp.float32, 0.5, 1.5)
        beta = jax.random.uniform(k2, (c,), jnp.float32, -0.1, 0.1)
        mean = jax.random.uniform(k3, (c,), jnp.float32, -0.1, 0.1)
        var = jax.random.uniform(k4, (c,), jnp.float32, 0.5, 1.5)
        return gamma, beta, mean, var

    params = {
        'conv1': conv_w(ks[0], c1, in_channels, 1, 1), 'bn1': bn_p(ks[1], c1),
        'conv2': conv_w(ks[2], c2, c1, 1, 1),          'bn2': bn_p(ks[3], c2),
        'conv3': conv_w(ks[4], c1, c2, 1, 3),          'bn3': bn_p(ks[5], c1),
        'conv4': conv_w(ks[6], c1, c1, 3, 1),          'bn4': bn_p(ks[7], c1),
        'conv5': conv_w(ks[8], out_channels, c1, 1, 1), 'bn5': bn_p(ks[9], out_channels),
    }
    if stride == 2 or in_channels != out_channels:
        params['conv_sc'] = conv_w(ks[10], out_channels, in_channels, 1, 1)
        params['bn_sc'] = bn_p(ks[11], out_channels)
    return params, (c1, c2)


def _bn_fold(gamma, beta, mean, var, eps=1e-5):
    scale = gamma / jnp.sqrt(var + eps)
    shift = beta - mean * scale
    return scale, shift


def _prep_kernel_params(params, in_channels, out_channels, stride, compute_dtype):
    has_sc = 'conv_sc' in params
    if not has_sc:
        assert stride == 1 and in_channels == out_channels, \
            "identity shortcut requires stride == 1 and Cin == Cout"

    def fold_1x1(name, bn_name):
        scale, shift = _bn_fold(*params[bn_name])
        w = params[name][:, :, 0, 0].T * scale[None, :]     # (Cin, Cout)
        return w, shift

    w1, b1 = fold_1x1('conv1', 'bn1')
    w2, b2 = fold_1x1('conv2', 'bn2')
    w5, b5 = fold_1x1('conv5', 'bn5')

    # (1,3) / (3,1) convs: stack the 3 taps along the contraction dim so the
    # kernel does ONE matmul per conv ([left|center|right] / [up|center|down]).
    s3, b3 = _bn_fold(*params['bn3'])
    w3 = jnp.concatenate(
        [params['conv3'][:, :, 0, t].T * s3[None, :] for t in range(3)], axis=0)
    s4, b4 = _bn_fold(*params['bn4'])
    w4 = jnp.concatenate(
        [params['conv4'][:, :, t, 0].T * s4[None, :] for t in range(3)], axis=0)

    C1, C2 = w1.shape[1], w2.shape[1]
    # Pad output channels to a lane-dense multiple of 128 (unmasked stores).
    Coutp = _round_up(out_channels, 128)
    pad = Coutp - out_channels
    w5 = jnp.pad(w5, ((0, 0), (0, pad)))
    b5 = jnp.pad(b5, ((0, pad),))

    weights = [w1, w2, w3, w4, w5]
    if has_sc:
        wsc, bsc = fold_1x1('conv_sc', 'bn_sc')
        wsc = jnp.pad(wsc, ((0, 0), (0, pad)))
        b5 = b5 + jnp.pad(bsc, ((0, pad),))     # combined conv5 + shortcut bias
        weights.append(wsc)

    # All bias vectors packed into one (8, Cmax) f32 block (single DMA).
    cmax = max(Coutp, C1, C2, 128)
    row = lambda b: jnp.pad(b, ((0, cmax - b.shape[0]),))
    zeros = jnp.zeros((cmax,), jnp.float32)
    biases = jnp.stack([row(b1), row(b2), row(b3), row(b4), row(b5),
                        zeros, zeros, zeros], axis=0).astype(jnp.float32)

    weights = tuple(w.astype(compute_dtype) for w in weights)
    return weights, biases, (C1, C2, Coutp), has_sc


def _make_masks(tile_rows, HW_p, Hs, Ws):
    """Per-row boundary masks (left/right/up/down) as a (tile_rows, 8) f32."""
    r = jnp.arange(tile_rows, dtype=jnp.int32)
    local = r % HW_p
    w_pos = local % Ws
    h_pos = local // Ws
    m = jnp.stack([w_pos != 0, w_pos != Ws - 1,
                   h_pos != 0, h_pos != Hs - 1], axis=1).astype(jnp.float32)
    return jnp.pad(m, ((0, 0), (0, 4)))                     # (tile_rows, 8)


# -----------------------------------------------------------------------------
# Tile sizing: biggest row tile that fits a conservative VMEM budget.
# -----------------------------------------------------------------------------
def _vmem_bytes_estimate(tile_rows, Cin, C1, C2, Coutp, has_sc, out_itemsize=2):
    f32, bf16 = 4, 2
    # double-buffered pipelined input / output tiles
    io = 2 * tile_rows * Cin * bf16 + 2 * tile_rows * Coutp * out_itemsize
    # resident constants (assume double-buffered by the default pipeliner)
    wb = (Cin * C1 + C1 * C2 + 3 * C2 * C1 + 3 * C1 * C1 + C1 * Coutp
          + (Cin * Coutp if has_sc else 0)) * bf16
    wb += 8 * max(Coutp, C1, C2, 128) * f32 + tile_rows * 8 * f32
    # live f32 activation slabs (taps, matmul results, residual) — generous.
    act = tile_rows * (6 * max(C1, C2) + 2 * Coutp + 2 * C1 + C2) * f32
    return io + 2 * wb + act


def _pick_images_per_tile(n_images, rows_per_image, fits, target_rows=2048):
    """Whole images per row-tile, aiming for ~target_rows rows per grid step."""
    bpt = max(1, min(n_images, max(1, target_rows // max(rows_per_image, 1))))
    while bpt > 1 and (n_images % bpt or not fits(bpt * rows_per_image)):
        bpt -= 1
    # Give both v7x TensorCores work (>=2 grid steps) only if tiles stay big;
    # on single-TC v5e/v6e extra steps are pure per-step overhead.
    if n_images // bpt < 2:
        cand = bpt - 1
        while cand > 1 and (n_images % cand or not fits(cand * rows_per_image)):
            cand -= 1
        if (cand >= 1 and n_images % cand == 0 and n_images // cand >= 2
                and cand * rows_per_image >= 512):
            bpt = cand
    return bpt


# -----------------------------------------------------------------------------
# Row-layout entry point (chain consecutive blocks in this layout) + NCHW wrap
# -----------------------------------------------------------------------------
def _nchw_to_rows(x_nchw, stride, compute_dtype):
    N, C, H, W = x_nchw.shape
    # stride folded as input subsampling (exact: the only strided convs are 1x1)
    x = jnp.transpose(x_nchw, (0, 2, 3, 1))[:, ::stride, ::stride, :]
    Hs, Ws = x.shape[1], x.shape[2]
    HW = Hs * Ws
    HW_p = _round_up(HW, 8)                     # sublane-aligned rows per image
    x3 = x.reshape(N, HW, C)
    if HW_p != HW:
        x3 = jnp.pad(x3, ((0, 0), (0, HW_p - HW), (0, 0)))
    return x3.reshape(N * HW_p, C).astype(compute_dtype), (N, Hs, Ws, HW, HW_p)


def basic_block_pallas_rows(x_rows, params, in_channels, out_channels, stride,
                            geom, compute_dtype=jnp.bfloat16,
                            out_dtype=jnp.bfloat16):
    N, Hs, Ws, HW, HW_p = geom

    weights, biases, (C1, C2, Coutp), has_sc = _prep_kernel_params(
        params, in_channels, out_channels, stride, compute_dtype)

    budget = 24 << 20            # keep tiles comfortable on v7x's 64 MiB VMEM
    fits = lambda tr: _vmem_bytes_estimate(tr, in_channels, C1, C2, Coutp,
                                           has_sc) <= budget
    bpt = _pick_images_per_tile(N, HW_p, fits)
    tile_rows = bpt * HW_p
    grid = N // bpt

    masks = _make_masks(tile_rows, HW_p, Hs, Ws)
    kernel = _make_kernel(Ws, C1, C2, in_channels, Coutp, tile_rows, has_sc,
                          compute_dtype)

    consts = (*weights, biases, masks)
    in_specs = [pl.BlockSpec((tile_rows, in_channels), lambda i: (i, 0))] + [
        pl.BlockSpec(a.shape, lambda i, _nd=a.ndim: (0,) * _nd) for a in consts
    ]
    out_spec = pl.BlockSpec((tile_rows, Coutp), lambda i: (i, 0))

    est = _vmem_bytes_estimate(tile_rows, in_channels, C1, C2, Coutp, has_sc)
    vmem_limit = min(max(int(est * 1.5) + (8 << 20), 32 << 20), 64 << 20)

    out2 = pl.pallas_call(
        kernel,
        out_shape=jax.ShapeDtypeStruct((N * HW_p, Coutp), out_dtype),
        grid_spec=pltpu.PrefetchScalarGridSpec(
            num_scalar_prefetch=0,
            grid=(grid,),
            in_specs=in_specs,
            out_specs=out_spec,
        ),
        compiler_params=pltpu.CompilerParams(
            dimension_semantics=("parallel",),
            vmem_limit_bytes=vmem_limit),
    )(x_rows, *consts)
    return out2                                            # (N*HW_p, Coutp) bf16


def basic_block_pallas(x_nchw, params, in_channels, out_channels, stride,
                       compute_dtype=jnp.bfloat16):
    assert x_nchw.shape[1] == in_channels
    x_rows, geom = _nchw_to_rows(x_nchw, stride, compute_dtype)
    out_rows = basic_block_pallas_rows(x_rows, params, in_channels,
                                       out_channels, stride, geom,
                                       compute_dtype)
    N, Hs, Ws, HW, HW_p = geom
    out = out_rows.reshape(N, HW_p, -1)[:, :HW, :out_channels]
    out = out.reshape(N, Hs, Ws, out_channels)
    return jnp.transpose(out, (0, 3, 1, 2)).astype(x_nchw.dtype)   # NCHW


# -----------------------------------------------------------------------------
# Pure-JAX reference (mirrors the PyTorch forward, eval-mode BN) for validation
# -----------------------------------------------------------------------------
def basic_block_ref(x, params, stride):
    def conv(x, w, strides=(1, 1), pad=((0, 0), (0, 0))):
        return jax.lax.conv_general_dilated(
            x, w, window_strides=strides, padding=pad,
            dimension_numbers=('NCHW', 'OIHW', 'NCHW'))

    def bn(x, p, eps=1e-5):
        g, b, m, v = p
        inv = g / jnp.sqrt(v + eps)
        return x * inv[None, :, None, None] + (b - m * inv)[None, :, None, None]

    relu = lambda t: jnp.maximum(t, 0.0)
    o = relu(bn(conv(x, params['conv1'], (stride, stride)), params['bn1']))
    o = relu(bn(conv(o, params['conv2']), params['bn2']))
    o = relu(bn(conv(o, params['conv3'], pad=((0, 0), (1, 1))), params['bn3']))
    o = relu(bn(conv(o, params['conv4'], pad=((1, 1), (0, 0))), params['bn4']))
    o = bn(conv(o, params['conv5']), params['bn5'])
    if 'conv_sc' in params:
        sc = bn(conv(x, params['conv_sc'], (stride, stride)), params['bn_sc'])
    else:
        sc = x
    return relu(o + sc)


if __name__ == "__main__":
    key = jax.random.PRNGKey(0)
    # (in_channels, out_channels, stride, N, H, W)
    cases = [
        (32, 64, 1, 2, 8, 8),    # projection shortcut
        (32, 32, 1, 2, 7, 7),    # identity shortcut, HW not a multiple of 8
        (16, 32, 2, 2, 9, 9),    # strided block (reduction = 1)
    ]
    for idx, (cin, cout, stride, N, H, W) in enumerate(cases):
        k_params, k_x = jax.random.split(jax.random.fold_in(key, idx))
        params, _ = init_params(k_params, cin, cout, stride)
        x = jax.random.normal(k_x, (N, cin, H, W), jnp.float32)

        out = basic_block_pallas(x, params, cin, cout, stride)
        out = jax.block_until_ready(out)

        ref = basic_block_ref(x, params, stride)
        assert out.shape == ref.shape, (idx, out.shape, ref.shape)
        outf = out.astype(jnp.float32)
        max_err = float(jnp.max(jnp.abs(outf - ref)))
        # bf16 MXU matmuls + bf16 output vs. a pure-f32 reference -> loose tol.
        assert bool(jnp.allclose(outf, ref, atol=7e-2, rtol=7e-2)), \
            f"case {idx}: max_err={max_err}"

    print("KERNEL_OK")
</pallas_src>

<mosaic_0001>
module attributes {stable_mosaic.version = 11 : i64} {
  func.func @kernel(%arg0: i32, %arg1: memref<128x32xbf16, #tpu.memory_space<vmem>>, %arg2: memref<32x16xbf16, #tpu.memory_space<vmem>>, %arg3: memref<16x8xbf16, #tpu.memory_space<vmem>>, %arg4: memref<24x16xbf16, #tpu.memory_space<vmem>>, %arg5: memref<48x16xbf16, #tpu.memory_space<vmem>>, %arg6: memref<16x128xbf16, #tpu.memory_space<vmem>>, %arg7: memref<32x128xbf16, #tpu.memory_space<vmem>>, %arg8: memref<8x128xf32, #tpu.memory_space<vmem>>, %arg9: memref<128x8xf32, #tpu.memory_space<vmem>>, %arg10: memref<128x128xbf16, #tpu.memory_space<vmem>>) attributes {dimension_semantics = [#tpu.dimension_semantics<parallel>], iteration_bounds = array<i64: 1>, scalar_prefetch = 0 : i64, scratch_operands = 0 : i64, tpu.core_type = #tpu.core_type<tc>, window_params = [{transform_indices = @transform_0, window_bounds = array<i64: 128, 32>}, {pipeline_mode = #tpu.pipeline_mode<synchronous>, transform_indices = @transform_1, window_bounds = array<i64: 32, 16>}, {pipeline_mode = #tpu.pipeline_mode<synchronous>, transform_indices = @transform_2, window_bounds = array<i64: 16, 8>}, {pipeline_mode = #tpu.pipeline_mode<synchronous>, transform_indices = @transform_3, window_bounds = array<i64: 24, 16>}, {pipeline_mode = #tpu.pipeline_mode<synchronous>, transform_indices = @transform_4, window_bounds = array<i64: 48, 16>}, {pipeline_mode = #tpu.pipeline_mode<synchronous>, transform_indices = @transform_5, window_bounds = array<i64: 16, 128>}, {pipeline_mode = #tpu.pipeline_mode<synchronous>, transform_indices = @transform_6, window_bounds = array<i64: 32, 128>}, {pipeline_mode = #tpu.pipeline_mode<synchronous>, transform_indices = @transform_7, window_bounds = array<i64: 8, 128>}, {pipeline_mode = #tpu.pipeline_mode<synchronous>, transform_indices = @transform_8, window_bounds = array<i64: 128, 8>}, {transform_indices = @transform_9, window_bounds = array<i64: 128, 128>}]} {
    %c0 = arith.constant 0 : index
    %c0_0 = arith.constant 0 : index
    %0 = vector.load %arg9[%c0, %c0_0] : memref<128x8xf32, #tpu.memory_space<vmem>>, vector<128x8xf32>
    %1 = vector.extract_strided_slice %0 {offsets = [0, 0], sizes = [128, 1], strides = [1, 1]} : vector<128x8xf32> to vector<128x1xf32>
    %2 = vector.extract_strided_slice %0 {offsets = [0, 1], sizes = [128, 1], strides = [1, 1]} : vector<128x8xf32> to vector<128x1xf32>
    %3 = vector.extract_strided_slice %0 {offsets = [0, 2], sizes = [128, 1], strides = [1, 1]} : vector<128x8xf32> to vector<128x1xf32>
    %4 = vector.extract_strided_slice %0 {offsets = [0, 3], sizes = [128, 1], strides = [1, 1]} : vector<128x8xf32> to vector<128x1xf32>
    %c0_1 = arith.constant 0 : index
    %c0_2 = arith.constant 0 : index
    %5 = vector.load %arg1[%c0_1, %c0_2] : memref<128x32xbf16, #tpu.memory_space<vmem>>, vector<128x32xbf16>
    %c0_3 = arith.constant 0 : index
    %c0_4 = arith.constant 0 : index
    %6 = vector.load %arg2[%c0_3, %c0_4] : memref<32x16xbf16, #tpu.memory_space<vmem>>, vector<32x16xbf16>
    %cst = arith.constant dense<0.000000e+00> : vector<128x16xf32>
    %7 = tpu.matmul %5, %6, %cst {dimension_numbers = #tpu.dot_dimension_numbers<[1], [0], [0], [1], [0, 0, 1, 1], [], []>} : vector<128x32xbf16>, vector<32x16xbf16>, vector<128x16xf32> -> vector<128x16xf32>
    %c0_5 = arith.constant 0 : index
    %c0_6 = arith.constant 0 : index
    %8 = vector.load %arg8[%c0_5, %c0_6] : memref<8x128xf32, #tpu.memory_space<vmem>>, vector<1x16xf32>
    %9 = vector.broadcast %8 : vector<1x16xf32> to vector<128x16xf32>
    %10 = arith.addf %7, %9 : vector<128x16xf32>
    %cst_7 = arith.constant 0.000000e+00 : f32
    %11 = vector.broadcast %cst_7 : f32 to vector<128x16xf32>
    %12 = arith.maximumf %10, %11 : vector<128x16xf32>
    %13 = arith.truncf %12 : vector<128x16xf32> to vector<128x16xbf16>
    %c0_8 = arith.constant 0 : index
    %c0_9 = arith.constant 0 : index
    %14 = vector.load %arg3[%c0_8, %c0_9] : memref<16x8xbf16, #tpu.memory_space<vmem>>, vector<16x8xbf16>
    %cst_10 = arith.constant dense<0.000000e+00> : vector<128x8xf32>
    %15 = tpu.matmul %13, %14, %cst_10 {dimension_numbers = #tpu.dot_dimension_numbers<[1], [0], [0], [1], [0, 0, 1, 1], [], []>} : vector<128x16xbf16>, vector<16x8xbf16>, vector<128x8xf32> -> vector<128x8xf32>
    %c1 = arith.constant 1 : index
    %c0_11 = arith.constant 0 : index
    %16 = vector.load %arg8[%c1, %c0_11] : memref<8x128xf32, #tpu.memory_space<vmem>>, vector<1x8xf32>
    %17 = vector.broadcast %16 : vector<1x8xf32> to vector<128x8xf32>
    %18 = arith.addf %15, %17 : vector<128x8xf32>
    %cst_12 = arith.constant 0.000000e+00 : f32
    %19 = vector.broadcast %cst_12 : f32 to vector<128x8xf32>
    %20 = arith.maximumf %18, %19 : vector<128x8xf32>
    %c1_i32 = arith.constant 1 : i32
    %21 = tpu.dynamic_rotate %20 by %c1_i32 dim 0 : vector<128x8xf32>, i32 -> vector<128x8xf32>
    %22 = vector.broadcast %1 : vector<128x1xf32> to vector<128x8xf32>
    %23 = arith.mulf %21, %22 : vector<128x8xf32>
    %c127_i32 = arith.constant 127 : i32
    %24 = tpu.dynamic_rotate %20 by %c127_i32 dim 0 : vector<128x8xf32>, i32 -> vector<128x8xf32>
    %25 = vector.broadcast %2 : vector<128x1xf32> to vector<128x8xf32>
    %26 = arith.mulf %24, %25 : vector<128x8xf32>
    %27 = tpu.concatenate %23, %20, %26 in 1 : vector<128x8xf32>, vector<128x8xf32>, vector<128x8xf32> -> vector<128x24xf32>
    %28 = arith.truncf %27 : vector<128x24xf32> to vector<128x24xbf16>
    %c0_13 = arith.constant 0 : index
    %c0_14 = arith.constant 0 : index
    %29 = vector.load %arg4[%c0_13, %c0_14] : memref<24x16xbf16, #tpu.memory_space<vmem>>, vector<24x16xbf16>
    %cst_15 = arith.constant dense<0.000000e+00> : vector<128x16xf32>
    %30 = tpu.matmul %28, %29, %cst_15 {dimension_numbers = #tpu.dot_dimension_numbers<[1], [0], [0], [1], [0, 0, 1, 1], [], []>} : vector<128x24xbf16>, vector<24x16xbf16>, vector<128x16xf32> -> vector<128x16xf32>
    %c2 = arith.constant 2 : index
    %c0_16 = arith.constant 0 : index
    %31 = vector.load %arg8[%c2, %c0_16] : memref<8x128xf32, #tpu.memory_space<vmem>>, vector<1x16xf32>
    %32 = vector.broadcast %31 : vector<1x16xf32> to vector<128x16xf32>
    %33 = arith.addf %30, %32 : vector<128x16xf32>
    %cst_17 = arith.constant 0.000000e+00 : f32
    %34 = vector.broadcast %cst_17 : f32 to vector<128x16xf32>
    %35 = arith.maximumf %33, %34 : vector<128x16xf32>
    %c8_i32 = arith.constant 8 : i32
    %36 = tpu.dynamic_rotate %35 by %c8_i32 dim 0 : vector<128x16xf32>, i32 -> vector<128x16xf32>
    %37 = vector.broadcast %3 : vector<128x1xf32> to vector<128x16xf32>
    %38 = arith.mulf %36, %37 : vector<128x16xf32>
    %c120_i32 = arith.constant 120 : i32
    %39 = tpu.dynamic_rotate %35 by %c120_i32 dim 0 : vector<128x16xf32>, i32 -> vector<128x16xf32>
    %40 = vector.broadcast %4 : vector<128x1xf32> to vector<128x16xf32>
    %41 = arith.mulf %39, %40 : vector<128x16xf32>
    %42 = tpu.concatenate %38, %35, %41 in 1 : vector<128x16xf32>, vector<128x16xf32>, vector<128x16xf32> -> vector<128x48xf32>
    %43 = arith.truncf %42 : vector<128x48xf32> to vector<128x48xbf16>
    %c0_18 = arith.constant 0 : index
    %c0_19 = arith.constant 0 : index
    %44 = vector.load %arg5[%c0_18, %c0_19] : memref<48x16xbf16, #tpu.memory_space<vmem>>, vector<48x16xbf16>
    %cst_20 = arith.constant dense<0.000000e+00> : vector<128x16xf32>
    %45 = tpu.matmul %43, %44, %cst_20 {dimension_numbers = #tpu.dot_dimension_numbers<[1], [0], [0], [1], [0, 0, 1, 1], [], []>} : vector<128x48xbf16>, vector<48x16xbf16>, vector<128x16xf32> -> vector<128x16xf32>
    %c3 = arith.constant 3 : index
    %c0_21 = arith.constant 0 : index
    %46 = vector.load %arg8[%c3, %c0_21] : memref<8x128xf32, #tpu.memory_space<vmem>>, vector<1x16xf32>
    %47 = vector.broadcast %46 : vector<1x16xf32> to vector<128x16xf32>
    %48 = arith.addf %45, %47 : vector<128x16xf32>
    %cst_22 = arith.constant 0.000000e+00 : f32
    %49 = vector.broadcast %cst_22 : f32 to vector<128x16xf32>
    %50 = arith.maximumf %48, %49 : vector<128x16xf32>
    %51 = arith.truncf %50 : vector<128x16xf32> to vector<128x16xbf16>
    %c0_23 = arith.constant 0 : index
    %c0_24 = arith.constant 0 : index
    %52 = vector.load %arg6[%c0_23, %c0_24] : memref<16x128xbf16, #tpu.memory_space<vmem>>, vector<16x128xbf16>
    %cst_25 = arith.constant dense<0.000000e+00> : vector<128x128xf32>
    %53 = tpu.matmul %51, %52, %cst_25 {dimension_numbers = #tpu.dot_dimension_numbers<[1], [0], [0], [1], [0, 0, 1, 1], [], []>} : vector<128x16xbf16>, vector<16x128xbf16>, vector<128x128xf32> -> vector<128x128xf32>
    %c4 = arith.constant 4 : index
    %c0_26 = arith.constant 0 : index
    %54 = vector.load %arg8[%c4, %c0_26] : memref<8x128xf32, #tpu.memory_space<vmem>>, vector<1x128xf32>
    %55 = vector.broadcast %54 : vector<1x128xf32> to vector<128x128xf32>
    %56 = arith.addf %53, %55 : vector<128x128xf32>
    %c0_27 = arith.constant 0 : index
    %c0_28 = arith.constant 0 : index
    %57 = vector.load %arg7[%c0_27, %c0_28] : memref<32x128xbf16, #tpu.memory_space<vmem>>, vector<32x128xbf16>
    %cst_29 = arith.constant dense<0.000000e+00> : vector<128x128xf32>
    %58 = tpu.matmul %5, %57, %cst_29 {dimension_numbers = #tpu.dot_dimension_numbers<[1], [0], [0], [1], [0, 0, 1, 1], [], []>} : vector<128x32xbf16>, vector<32x128xbf16>, vector<128x128xf32> -> vector<128x128xf32>
    %59 = arith.addf %56, %58 : vector<128x128xf32>
    %cst_30 = arith.constant 0.000000e+00 : f32
    %60 = vector.broadcast %cst_30 : f32 to vector<128x128xf32>
    %61 = arith.maximumf %59, %60 : vector<128x128xf32>
    %62 = arith.truncf %61 : vector<128x128xf32> to vector<128x128xbf16>
    %c0_31 = arith.constant 0 : index
    %c0_32 = arith.constant 0 : index
    %63 = vector.load %arg10[%c0_31, %c0_32] : memref<128x128xbf16, #tpu.memory_space<vmem>>, vector<128x128xbf16>
    tpu.vector_store %arg10[%c0_31, %c0_32], %62 {strides = array<i32>} : memref<128x128xbf16, #tpu.memory_space<vmem>>, vector<128x128xbf16>,
    return
  }
  func.func @transform_0(%arg0: i32) -> (i32, i32) {
    %c0_i32 = arith.constant 0 : i32
    %c0_i32_0 = arith.constant 0 : i32
    return %arg0, %c0_i32 : i32, i32
  }
  func.func @transform_1(%arg0: i32) -> (i32, i32) {
    %c0_i32 = arith.constant 0 : i32
    %c0_i32_0 = arith.constant 0 : i32
    %c0_i32_1 = arith.constant 0 : i32
    return %c0_i32, %c0_i32_0 : i32, i32
  }
  func.func @transform_2(%arg0: i32) -> (i32, i32) {
    %c0_i32 = arith.constant 0 : i32
    %c0_i32_0 = arith.constant 0 : i32
    %c0_i32_1 = arith.constant 0 : i32
    return %c0_i32, %c0_i32_0 : i32, i32
  }
  func.func @transform_3(%arg0: i32) -> (i32, i32) {
    %c0_i32 = arith.constant 0 : i32
    %c0_i32_0 = arith.constant 0 : i32
    %c0_i32_1 = arith.constant 0 : i32
    return %c0_i32, %c0_i32_0 : i32, i32
  }
  func.func @transform_4(%arg0: i32) -> (i32, i32) {
    %c0_i32 = arith.constant 0 : i32
    %c0_i32_0 = arith.constant 0 : i32
    %c0_i32_1 = arith.constant 0 : i32
    return %c0_i32, %c0_i32_0 : i32, i32
  }
  func.func @transform_5(%arg0: i32) -> (i32, i32) {
    %c0_i32 = arith.constant 0 : i32
    %c0_i32_0 = arith.constant 0 : i32
    %c0_i32_1 = arith.constant 0 : i32
    return %c0_i32, %c0_i32_0 : i32, i32
  }
  func.func @transform_6(%arg0: i32) -> (i32, i32) {
    %c0_i32 = arith.constant 0 : i32
    %c0_i32_0 = arith.constant 0 : i32
    %c0_i32_1 = arith.constant 0 : i32
    return %c0_i32, %c0_i32_0 : i32, i32
  }
  func.func @transform_7(%arg0: i32) -> (i32, i32) {
    %c0_i32 = arith.constant 0 : i32
    %c0_i32_0 = arith.constant 0 : i32
    %c0_i32_1 = arith.constant 0 : i32
    return %c0_i32, %c0_i32_0 : i32, i32
  }
  func.func @transform_8(%arg0: i32) -> (i32, i32) {
    %c0_i32 = arith.constant 0 : i32
    %c0_i32_0 = arith.constant 0 : i32
    %c0_i32_1 = arith.constant 0 : i32
    return %c0_i32, %c0_i32_0 : i32, i32
  }
  func.func @transform_9(%arg0: i32) -> (i32, i32) {
    %c0_i32 = arith.constant 0 : i32
    %c0_i32_0 = arith.constant 0 : i32
    return %arg0, %c0_i32 : i32, i32
  }
}

</mosaic_0001>

<llo_original>
// kernel: tpu_custom_call.1
$region0: #{tpu_custom_call.1}
  #allocation0 [shape = 'u32[]', space=smem, size = 0x4, offset = 0x4, fixed_abs, tag = 'smem constant byte address 0x4 - core index']
  #allocation1 [shape = 'u32[144,128]{1,0:T(1,128)}', space=vmem, size = 0x12000, scoped, tag = 'internal scratch']
  %s0 = inlined_call_operand.vmem [shape: bf16[128,32], index: 0, kind: input, shape index: {}]
  %s1 = inlined_call_operand.vmem [shape: bf16[32,16], index: 1, kind: input, shape index: {}]
  %s2 = inlined_call_operand.vmem [shape: bf16[16,8], index: 2, kind: input, shape index: {}]
  %s3 = inlined_call_operand.vmem [shape: bf16[24,16], index: 3, kind: input, shape index: {}]
  %s4 = inlined_call_operand.vmem [shape: bf16[48,16], index: 4, kind: input, shape index: {}]
  %s5 = inlined_call_operand.vmem [shape: bf16[16,128], index: 5, kind: input, shape index: {}]
  %s6 = inlined_call_operand.vmem [shape: bf16[32,128], index: 6, kind: input, shape index: {}]
  %s7 = inlined_call_operand.vmem [shape: f32[8,128], index: 7, kind: input, shape index: {}]
  %s8 = inlined_call_operand.vmem [shape: f32[128,8], index: 8, kind: input, shape index: {}]
  %s9 = inlined_call_operand.hbm [shape: bf16[128,128], index: 9, kind: output, shape index: {}]
  %s10 = sld [smem:[#allocation0]]
  $region46: #{tpu_custom_call.1} parent=0
    _
  %s12 = ssub.s32 1, %s10
  %s13 = scalar_select 0, %s12, %s10
  $region1: #{tpu_custom_call.1} parent=0
    #allocation2 [shape = 'u8[32768]{0}', space=vmem, size = 0x8000, scoped, tag = 'output window, operand 0, single buffered']
    #allocation3 [shape = 's32[1]{0}', space=sflag, size = 0x4, scoped, tag = 'scoped memory for tpu_custom_call.1']
    %14 = vsyncpa [#allocation3], 0
    // Predicated region
    $region2: #{tpu_custom_call.1} parent=1 // pred_check
      _
    $region3: #{tpu_custom_call.1} parent=1 // pred_check_branch
      %16 = sbr.rel (0) target = $region5
    $region4: #{tpu_custom_call.1} parent=1 // pred_region
      _
    $region5: #{tpu_custom_call.1} parent=1 // pred_fallthru
      _
    // Predicated region
    $region6: #{tpu_custom_call.1} parent=1 // pred_check
      _
    $region7: #{tpu_custom_call.1} parent=1 // pred_check_branch
      %18 = sbr.rel (0) target = $region9
    $region8: #{tpu_custom_call.1} parent=1 // pred_region
      _
    $region9: #{tpu_custom_call.1} parent=1 // pred_fallthru
      _
    // Predicated region
    $region10: #{tpu_custom_call.1} parent=1 // pred_check
      _
    $region11: #{tpu_custom_call.1} parent=1 // pred_check_branch
      %20 = sbr.rel (0) target = $region13
    $region12: #{tpu_custom_call.1} parent=1 // pred_region
      _
    $region13: #{tpu_custom_call.1} parent=1 // pred_fallthru
      _
    // Predicated region
    $region14: #{tpu_custom_call.1} parent=1 // pred_check
      _
    $region15: #{tpu_custom_call.1} parent=1 // pred_check_branch
      %22 = sbr.rel (0) target = $region17
    $region16: #{tpu_custom_call.1} parent=1 // pred_region
      _
    $region17: #{tpu_custom_call.1} parent=1 // pred_fallthru
      _
    // Predicated region
    $region18: #{tpu_custom_call.1} parent=1 // pred_check
      _
    $region19: #{tpu_custom_call.1} parent=1 // pred_check_branch
      %24 = sbr.rel (0) target = $region21
    $region20: #{tpu_custom_call.1} parent=1 // pred_region
      _
    $region21: #{tpu_custom_call.1} parent=1 // pred_fallthru
      _
    // Predicated region
    $region22: #{tpu_custom_call.1} parent=1 // pred_check
      _
    $region23: #{tpu_custom_call.1} parent=1 // pred_check_branch
      %26 = sbr.rel (0) target = $region25
    $region24: #{tpu_custom_call.1} parent=1 // pred_region
      _
    $region25: #{tpu_custom_call.1} parent=1 // pred_fallthru
      _
    // Predicated region
    $region26: #{tpu_custom_call.1} parent=1 // pred_check
      _
    $region27: #{tpu_custom_call.1} parent=1 // pred_check_branch
      %28 = sbr.rel (0) target = $region29
    $region28: #{tpu_custom_call.1} parent=1 // pred_region
      _
    $region29: #{tpu_custom_call.1} parent=1 // pred_fallthru
      _
    // Predicated region
    $region30: #{tpu_custom_call.1} parent=1 // pred_check
      _
    $region31: #{tpu_custom_call.1} parent=1 // pred_check_branch
      %30 = sbr.rel (0) target = $region33
    $region32: #{tpu_custom_call.1} parent=1 // pred_region
      _
    $region33: #{tpu_custom_call.1} parent=1 // pred_fallthru
      _
    // Predicated region
    $region34: #{tpu_custom_call.1} parent=1 // pred_check
      _
    $region35: #{tpu_custom_call.1} parent=1 // pred_check_branch
      %32 = sbr.rel (0) target = $region37
    $region36: #{tpu_custom_call.1} parent=1 // pred_region
      _
    $region37: #{tpu_custom_call.1} parent=1 // pred_fallthru
      _
    %v34 = vld [vmem:[%s8] sm:$0xff]
    %v35 = vld [vmem:[%s8 + $0x8] sm:$0xff]
    %v36 = vld [vmem:[%s8 + $0x10] sm:$0xff]
    %v37 = vld [vmem:[%s8 + $0x18] sm:$0xff]
    %v38 = vld [vmem:[%s8 + $0x20] sm:$0xff]
    %v39 = vld [vmem:[%s8 + $0x28] sm:$0xff]
    %v40 = vld [vmem:[%s8 + $0x30] sm:$0xff]
    %v41 = vld [vmem:[%s8 + $0x38] sm:$0xff]
    %v42 = vld [vmem:[%s8 + $0x40] sm:$0xff]
    %v43 = vld [vmem:[%s8 + $0x48] sm:$0xff]
    %v44 = vld [vmem:[%s8 + $0x50] sm:$0xff]
    %v45 = vld [vmem:[%s8 + $0x58] sm:$0xff]
    %v46 = vld [vmem:[%s8 + $0x60] sm:$0xff]
    %v47 = vld [vmem:[%s8 + $0x68] sm:$0xff]
    %v48 = vld [vmem:[%s8 + $0x70] sm:$0xff]
    %v49 = vld [vmem:[%s8 + $0x78] sm:$0xff]
    %v50 = vld [vmem:[%s0] sm:$0xf]
    %v51 = vld [vmem:[%s0 + $0x4] sm:$0xf]
    %v52 = vld [vmem:[%s0 + $0x8] sm:$0xf]
    %v53 = vld [vmem:[%s0 + $0xc] sm:$0xf]
    %v54 = vld [vmem:[%s0 + $0x10] sm:$0xf]
    %v55 = vld [vmem:[%s0 + $0x14] sm:$0xf]
    %v56 = vld [vmem:[%s0 + $0x18] sm:$0xf]
    %v57 = vld [vmem:[%s0 + $0x1c] sm:$0xf]
    %v58 = vld [vmem:[%s0 + $0x20] sm:$0xf]
    %v59 = vld [vmem:[%s0 + $0x24] sm:$0xf]
    %v60 = vld [vmem:[%s0 + $0x28] sm:$0xf]
    %v61 = vld [vmem:[%s0 + $0x2c] sm:$0xf]
    %v62 = vld [vmem:[%s0 + $0x30] sm:$0xf]
    %v63 = vld [vmem:[%s0 + $0x34] sm:$0xf]
    %v64 = vld [vmem:[%s0 + $0x38] sm:$0xf]
    %v65 = vld [vmem:[%s0 + $0x3c] sm:$0xf]
    %v66 = vld [vmem:[%s1] sm:$0xf]
    %v67 = vld [vmem:[%s1 + $0x4] sm:$0xf]
    %v68 = vld [vmem:[%s1 + $0x8] sm:$0xf]
    %v69 = vld [vmem:[%s1 + $0xc] sm:$0xf]
    %v70 = vld [vmem:[%s7] sm:$0x1]
    %v71 = vlaneseq
    %v72 = vshrl.u32 %v71, 7
    %v73 = vsub.s32 0, %v72
    %v74 = vrot.slane %v70, %v73
    %v91 = vunpack.c.l.b16 %v50
    %v92 = vunpack.c.l.b16 %v51
    %v93 = vunpack.c.l.b16 %v52
    %v94 = vunpack.c.l.b16 %v53
    %v95 = vunpack.c.l.b16 %v54
    %v96 = vunpack.c.l.b16 %v55
    %v97 = vunpack.c.l.b16 %v56
    %v98 = vunpack.c.l.b16 %v57
    %v99 = vunpack.c.l.b16 %v58
    %v100 = vunpack.c.l.b16 %v59
    %v101 = vunpack.c.l.b16 %v60
    %v102 = vunpack.c.l.b16 %v61
    %v103 = vunpack.c.l.b16 %v62
    %v104 = vunpack.c.l.b16 %v63
    %v105 = vunpack.c.l.b16 %v64
    %v106 = vunpack.c.l.b16 %v65
    %v107 = vpack.c.b16 %v92, %v91
    %v108 = vpack.c.b16 %v94, %v93
    %v109 = vpack.c.b16 %v96, %v95
    %v110 = vpack.c.b16 %v98, %v97
    %v111 = vpack.c.b16 %v100, %v99
    %v112 = vpack.c.b16 %v102, %v101
    %v113 = vpack.c.b16 %v104, %v103
    %v114 = vpack.c.b16 %v106, %v105
    %v119 = vunpack.c.l.b16 %v66
    %v120 = vunpack.c.l.b16 %v67
    %v121 = vunpack.c.l.b16 %v68
    %v122 = vunpack.c.l.b16 %v69
    %v123 = vpack.c.b16 %v120, %v119
    %v124 = vpack.c.b16 %v122, %v121
    %vm127 = vcmask 261120
    %v129 = vsel %vm127, %v107, 0
    %v132 = vsel %vm127, %v108, 0
    %v135 = vsel %vm127, %v109, 0
    %v138 = vsel %vm127, %v110, 0
    %v141 = vsel %vm127, %v111, 0
    %v144 = vsel %vm127, %v112, 0
    %v147 = vsel %vm127, %v113, 0
    %v150 = vsel %vm127, %v114, 0
    %152 = vmatprep.subr.bf16.mxu0 0
    %153 = vmatpush1.bf16.msra.mxu0 0
    %154 = vmatprep.subr.bf16.mxu0 0
    %155 = vmatpush1.bf16.msra.mxu0 0
    %156 = vmatprep.subr.bf16.mxu0 0
    %157 = vmatpush1.bf16.msra.mxu0 0
    %158 = vmatprep.subr.bf16.mxu0 0
    %159 = vmatpush1.bf16.msra.mxu0 0
    %160 = vmatprep.subr.bf16.mxu0 0
    %161 = vmatpush1.bf16.msra.mxu0 0
    %162 = vmatprep.subr.bf16.mxu0 0
    %163 = vmatpush1.bf16.msra.mxu0 0
    %164 = vmatprep.subr.bf16.mxu0 0
    %165 = vmatpush1.bf16.msra.mxu0 %v124
    %166 = vmatprep.subr.bf16.mxu0 0
    %167 = vmatpush1.bf16.msra.mxu0 %v123
    %168 = vmatprep.subr.bf16.mxu0 0
    %169 = vmatpush2.bf16.msra.mxu0 0
    %170 = vmatprep.subr.bf16.mxu0 0
    %171 = vmatpush2.bf16.msra.mxu0 0
    %172 = vmatprep.subr.bf16.mxu0 0
    %173 = vmatpush2.bf16.msra.mxu0 0
    %174 = vmatprep.subr.bf16.mxu0 0
    %175 = vmatpush2.bf16.msra.mxu0 0
    %176 = vmatprep.subr.bf16.mxu0 0
    %177 = vmatpush2.bf16.msra.mxu0 0
    %178 = vmatprep.subr.bf16.mxu0 0
    %179 = vmatpush2.bf16.msra.mxu0 0
    %180 = vmatprep.subr.bf16.mxu0 0
    %181 = vmatpush2.bf16.msra.mxu0 0
    %182 = vmatprep.subr.bf16.mxu0 0
    %183 = vmatpush2.bf16.msra.mxu0 0
    %184 = vmatprep.mubr.bf16.mxu0 0
    %185 = vmatmul.mubr.bf16.gmra.mxu0 %v129
    %v186 = vpop.f32.mrf.mxu0
    %v187 = vadd.f32 %v74, %v186
    %v188 = vpop.f32.mrf.mxu0
    %v189 = vpop.f32.mrf.mxu0
    %v190 = vadd.f32 %v74, %v189
    %v191 = vpop.f32.mrf.mxu0
    %192 = vmatprep.mubr.bf16.mxu0 0
    %193 = vmatmul.mubr.bf16.gmra.mxu0 %v132
    %v194 = vpop.f32.mrf.mxu0
    %v195 = vadd.f32 %v74, %v194
    %v196 = vpop.f32.mrf.mxu0
    %v197 = vpop.f32.mrf.mxu0
    %v198 = vadd.f32 %v74, %v197
    %v199 = vpop.f32.mrf.mxu0
    %200 = vmatprep.mubr.bf16.mxu0 0
    %201 = vmatmul.mubr.bf16.gmra.mxu0 %v135
    %v202 = vpop.f32.mrf.mxu0
    %v203 = vadd.f32 %v74, %v202
    %v204 = vpop.f32.mrf.mxu0
    %v205 = vpop.f32.mrf.mxu0
    %v206 = vadd.f32 %v74, %v205
    %v207 = vpop.f32.mrf.mxu0
    %208 = vmatprep.mubr.bf16.mxu0 0
    %209 = vmatmul.mubr.bf16.gmra.mxu0 %v138
    %v210 = vpop.f32.mrf.mxu0
    %v211 = vadd.f32 %v74, %v210
    %v212 = vpop.f32.mrf.mxu0
    %v213 = vpop.f32.mrf.mxu0
    %v214 = vadd.f32 %v74, %v213
    %v215 = vpop.f32.mrf.mxu0
    %216 = vmatprep.mubr.bf16.mxu0 0
    %217 = vmatmul.mubr.bf16.gmra.mxu0 %v141
    %v218 = vpop.f32.mrf.mxu0
    %v219 = vadd.f32 %v74, %v218
    %v220 = vpop.f32.mrf.mxu0
    %v221 = vpop.f32.mrf.mxu0
    %v222 = vadd.f32 %v74, %v221
    %v223 = vpop.f32.mrf.mxu0
    %224 = vmatprep.mubr.bf16.mxu0 0
    %225 = vmatmul.mubr.bf16.gmra.mxu0 %v144
    %v226 = vpop.f32.mrf.mxu0
    %v227 = vadd.f32 %v74, %v226
    %v228 = vpop.f32.mrf.mxu0
    %v229 = vpop.f32.mrf.mxu0
    %v230 = vadd.f32 %v74, %v229
    %v231 = vpop.f32.mrf.mxu0
    %232 = vmatprep.mubr.bf16.mxu0 0
    %233 = vmatmul.mubr.bf16.gmra.mxu0 %v147
    %v234 = vpop.f32.mrf.mxu0
    %v235 = vadd.f32 %v74, %v234
    %v236 = vpop.f32.mrf.mxu0
    %v237 = vpop.f32.mrf.mxu0
    %v238 = vadd.f32 %v74, %v237
    %v239 = vpop.f32.mrf.mxu0
    %240 = vmatprep.mubr.bf16.mxu0 0
    %241 = vmatmul.mubr.bf16.gmra.mxu0 %v150
    %v242 = vpop.f32.mrf.mxu0
    %v243 = vadd.f32 %v74, %v242
    %v244 = vpop.f32.mrf.mxu0
    %v245 = vpop.f32.mrf.mxu0
    %v246 = vadd.f32 %v74, %v245
    %v247 = vpop.f32.mrf.mxu0
    %248 = vdwg.mxu0
    %v249 = vmax.f32 %v187, 0.0
    %v250 = vmax.f32 %v190, 0.0
    %v251 = vmax.f32 %v195, 0.0
    %v252 = vmax.f32 %v198, 0.0
    %v253 = vmax.f32 %v203, 0.0
    %v254 = vmax.f32 %v206, 0.0
    %v255 = vmax.f32 %v211, 0.0
    %v256 = vmax.f32 %v214, 0.0
    %v257 = vmax.f32 %v219, 0.0
    %v258 = vmax.f32 %v222, 0.0
    %v259 = vmax.f32 %v227, 0.0
    %v260 = vmax.f32 %v230, 0.0
    %v261 = vmax.f32 %v235, 0.0
    %v262 = vmax.f32 %v238, 0.0
    %v263 = vmax.f32 %v243, 0.0
    %v264 = vmax.f32 %v246, 0.0
    %v265 = vpack.c.bf16 %v250, %v249
    %v266 = vpack.c.bf16 %v252, %v251
    %v267 = vpack.c.bf16 %v254, %v253
    %v268 = vpack.c.bf16 %v256, %v255
    %v269 = vpack.c.bf16 %v258, %v257
    %v270 = vpack.c.bf16 %v260, %v259
    %v271 = vpack.c.bf16 %v262, %v261
    %v272 = vpack.c.bf16 %v264, %v263
    %v273 = vld [vmem:[%s2] sm:$0xf]
    %v274 = vld [vmem:[%s2 + $0x4] sm:$0xf]
    %v275 = vld [vmem:[%s7 + $0x1] sm:$0x1]
    %v276 = vlaneseq
    %v277 = vshrl.u32 %v276, 7
    %v278 = vsub.s32 0, %v277
    %v279 = vrot.slane %v275, %v278
    %v282 = vunpack.c.l.b16 %v273
    %v283 = vunpack.c.l.b16 %v274
    %v284 = vpack.c.b16 %v283, %v282
    %vm286 = vcmask 130048
    %v288 = vsel %vm286, %v265, 0
    %v291 = vsel %vm286, %v266, 0
    %v294 = vsel %vm286, %v267, 0
    %v297 = vsel %vm286, %v268, 0
    %v300 = vsel %vm286, %v269, 0
    %v303 = vsel %vm286, %v270, 0
    %v306 = vsel %vm286, %v271, 0
    %v309 = vsel %vm286, %v272, 0
    %311 = vmatprep.subr.bf16.mxu0 0
    %312 = vmatpush1.bf16.msra.mxu0 0
    %313 = vmatprep.subr.bf16.mxu0 0
    %314 = vmatpush1.bf16.msra.mxu0 0
    %315 = vmatprep.subr.bf16.mxu0 0
    %316 = vmatpush1.bf16.msra.mxu0 0
    %317 = vmatprep.subr.bf16.mxu0 0
    %318 = vmatpush1.bf16.msra.mxu0 0
    %319 = vmatprep.subr.bf16.mxu0 0
    %320 = vmatpush1.bf16.msra.mxu0 0
    %321 = vmatprep.subr.bf16.mxu0 0
    %322 = vmatpush1.bf16.msra.mxu0 0
    %323 = vmatprep.subr.bf16.mxu0 0
    %324 = vmatpush1.bf16.msra.mxu0 0
    %325 = vmatprep.subr.bf16.mxu0 0
    %326 = vmatpush1.bf16.msra.mxu0 %v284
    %327 = vmatprep.subr.bf16.mxu0 0
    %328 = vmatpush2.bf16.msra.mxu0 0
    %329 = vmatprep.subr.bf16.mxu0 0
    %330 = vmatpush2.bf16.msra.mxu0 0
    %331 = vmatprep.subr.bf16.mxu0 0
    %332 = vmatpush2.bf16.msra.mxu0 0
    %333 = vmatprep.subr.bf16.mxu0 0
    %334 = vmatpush2.bf16.msra.mxu0 0
    %335 = vmatprep.subr.bf16.mxu0 0
    %336 = vmatpush2.bf16.msra.mxu0 0
    %337 = vmatprep.subr.bf16.mxu0 0
    %338 = vmatpush2.bf16.msra.mxu0 0
    %339 = vmatprep.subr.bf16.mxu0 0
    %340 = vmatpush2.bf16.msra.mxu0 0
    %341 = vmatprep.subr.bf16.mxu0 0
    %342 = vmatpush2.bf16.msra.mxu0 0
    %343 = vmatprep.mubr.bf16.mxu0 0
    %344 = vmatmul.mubr.bf16.gmra.mxu0 %v288
    %v345 = vpop.f32.mrf.mxu0
    %v346 = vadd.f32 %v279, %v345
    %v347 = vpop.f32.mrf.mxu0
    %v348 = vpop.f32.mrf.mxu0
    %v349 = vadd.f32 %v279, %v348
    %v350 = vpop.f32.mrf.mxu0
    %351 = vmatprep.mubr.bf16.mxu0 0
    %352 = vmatmul.mubr.bf16.gmra.mxu0 %v291
    %v353 = vpop.f32.mrf.mxu0
    %v354 = vadd.f32 %v279, %v353
    %v355 = vpop.f32.mrf.mxu0
    %v356 = vpop.f32.mrf.mxu0
    %v357 = vadd.f32 %v279, %v356
    %v358 = vpop.f32.mrf.mxu0
    %359 = vmatprep.mubr.bf16.mxu0 0
    %360 = vmatmul.mubr.bf16.gmra.mxu0 %v294
    %v361 = vpop.f32.mrf.mxu0
    %v362 = vadd.f32 %v279, %v361
    %v363 = vpop.f32.mrf.mxu0
    %v364 = vpop.f32.mrf.mxu0
    %v365 = vadd.f32 %v279, %v364
    %v366 = vpop.f32.mrf.mxu0
    %367 = vmatprep.mubr.bf16.mxu0 0
    %368 = vmatmul.mubr.bf16.gmra.mxu0 %v297
    %v369 = vpop.f32.mrf.mxu0
    %v370 = vadd.f32 %v279, %v369
    %v371 = vpop.f32.mrf.mxu0
    %v372 = vpop.f32.mrf.mxu0
    %v373 = vadd.f32 %v279, %v372
    %v374 = vpop.f32.mrf.mxu0
    %375 = vmatprep.mubr.bf16.mxu0 0
    %376 = vmatmul.mubr.bf16.gmra.mxu0 %v300
    %v377 = vpop.f32.mrf.mxu0
    %v378 = vadd.f32 %v279, %v377
    %v379 = vpop.f32.mrf.mxu0
    %v380 = vpop.f32.mrf.mxu0
    %v381 = vadd.f32 %v279, %v380
    %v382 = vpop.f32.mrf.mxu0
    %383 = vmatprep.mubr.bf16.mxu0 0
    %384 = vmatmul.mubr.bf16.gmra.mxu0 %v303
    %v385 = vpop.f32.mrf.mxu0
    %v386 = vadd.f32 %v279, %v385
    %v387 = vpop.f32.mrf.mxu0
    %v388 = vpop.f32.mrf.mxu0
    %v389 = vadd.f32 %v279, %v388
    %v390 = vpop.f32.mrf.mxu0
    %391 = vmatprep.mubr.bf16.mxu0 0
    %392 = vmatmul.mubr.bf16.gmra.mxu0 %v306
    %v393 = vpop.f32.mrf.mxu0
    %v394 = vadd.f32 %v279, %v393
    %v395 = vpop.f32.mrf.mxu0
    %v396 = vpop.f32.mrf.mxu0
    %v397 = vadd.f32 %v279, %v396
    %v398 = vpop.f32.mrf.mxu0
    %399 = vmatprep.mubr.bf16.mxu0 0
    %400 = vmatmul.mubr.bf16.gmra.mxu0 %v309
    %v401 = vpop.f32.mrf.mxu0
    %v402 = vadd.f32 %v279, %v401
    %v403 = vpop.f32.mrf.mxu0
    %v404 = vpop.f32.mrf.mxu0
    %v405 = vadd.f32 %v279, %v404
    %v406 = vpop.f32.mrf.mxu0
    %407 = vdwg.mxu0
    %v408 = vmax.f32 %v346, 0.0
    %v409 = vmax.f32 %v349, 0.0
    %v410 = vmax.f32 %v354, 0.0
    %v411 = vmax.f32 %v357, 0.0
    %v412 = vmax.f32 %v362, 0.0
    %v413 = vmax.f32 %v365, 0.0
    %v414 = vmax.f32 %v370, 0.0
    %v415 = vmax.f32 %v373, 0.0
    %v416 = vmax.f32 %v378, 0.0
    %v417 = vmax.f32 %v381, 0.0
    %v418 = vmax.f32 %v386, 0.0
    %v419 = vmax.f32 %v389, 0.0
    %v420 = vmax.f32 %v394, 0.0
    %v421 = vmax.f32 %v397, 0.0
    %v422 = vmax.f32 %v402, 0.0
    %v423 = vmax.f32 %v405, 0.0
    %v424 = vrot.slane %v408, 7
    %v425 = vrot.slane %v409, 7
    %v426 = vrot.slane %v410, 7
    %v427 = vrot.slane %v411, 7
    %v428 = vrot.slane %v412, 7
    %v429 = vrot.slane %v413, 7
    %v430 = vrot.slane %v414, 7
    %v431 = vrot.slane %v415, 7
    %v432 = vrot.slane %v416, 7
    %v433 = vrot.slane %v417, 7
    %v434 = vrot.slane %v418, 7
    %v435 = vrot.slane %v419, 7
    %v436 = vrot.slane %v420, 7
    %v437 = vrot.slane %v421, 7
    %v438 = vrot.slane %v422, 7
    %v439 = vrot.slane %v423, 7
    %v440 = vlaneseq
    %v441 = vshrl.u32 %v440, 7
    %vm442 = vcmp.lt.s32.totalorder %v441, 1
    %v443 = vsel %vm442, %v438, %v439
    %v444 = vsel %vm442, %v437, %v438
    %v445 = vsel %vm442, %v436, %v437
    %v446 = vsel %vm442, %v435, %v436
    %v447 = vsel %vm442, %v434, %v435
    %v448 = vsel %vm442, %v433, %v434
    %v449 = vsel %vm442, %v432, %v433
    %v450 = vsel %vm442, %v431, %v432
    %v451 = vsel %vm442, %v430, %v431
    %v452 = vsel %vm442, %v429, %v430
    %v453 = vsel %vm442, %v428, %v429
    %v454 = vsel %vm442, %v427, %v428
    %v455 = vsel %vm442, %v426, %v427
    %v456 = vsel %vm442, %v425, %v426
    %v457 = vsel %vm442, %v424, %v425
    %v458 = vsel %vm442, %v439, %v424
    %460 = vset.pattern.permute.xlu0 0
    %461 = vperm.xlu0 %460, %v34
    %v462 = vpop.permute.xlu0 %461
    %465 = vset.pattern.permute.xlu0 0
    %466 = vperm.xlu0 %465, %v35
    %v467 = vpop.permute.xlu0 %466
    %470 = vset.pattern.permute.xlu0 0
    %471 = vperm.xlu0 %470, %v36
    %v472 = vpop.permute.xlu0 %471
    %475 = vset.pattern.permute.xlu0 0
    %476 = vperm.xlu0 %475, %v37
    %v477 = vpop.permute.xlu0 %476
    %480 = vset.pattern.permute.xlu0 0
    %481 = vperm.xlu0 %480, %v38
    %v482 = vpop.permute.xlu0 %481
    %485 = vset.pattern.permute.xlu0 0
    %486 = vperm.xlu0 %485, %v39
    %v487 = vpop.permute.xlu0 %486
    %490 = vset.pattern.permute.xlu0 0
    %491 = vperm.xlu0 %490, %v40
    %v492 = vpop.permute.xlu0 %491
    %495 = vset.pattern.permute.xlu0 0
    %496 = vperm.xlu0 %495, %v41
    %v497 = vpop.permute.xlu0 %496
    %500 = vset.pattern.permute.xlu0 0
    %501 = vperm.xlu0 %500, %v42
    %v502 = vpop.permute.xlu0 %501
    %505 = vset.pattern.permute.xlu0 0
    %506 = vperm.xlu0 %505, %v43
    %v507 = vpop.permute.xlu0 %506
    %510 = vset.pattern.permute.xlu0 0
    %511 = vperm.xlu0 %510, %v44
    %v512 = vpop.permute.xlu0 %511
    %515 = vset.pattern.permute.xlu0 0
    %516 = vperm.xlu0 %515, %v45
    %v517 = vpop.permute.xlu0 %516
    %520 = vset.pattern.permute.xlu0 0
    %521 = vperm.xlu0 %520, %v46
    %v522 = vpop.permute.xlu0 %521
    %525 = vset.pattern.permute.xlu0 0
    %526 = vperm.xlu0 %525, %v47
    %v527 = vpop.permute.xlu0 %526
    %530 = vset.pattern.permute.xlu0 0
    %531 = vperm.xlu0 %530, %v48
    %v532 = vpop.permute.xlu0 %531
    %535 = vset.pattern.permute.xlu0 0
    %536 = vperm.xlu0 %535, %v49
    %v537 = vpop.permute.xlu0 %536
    %v539 = vmul.f32 %v458, %v462
    %v540 = vmul.f32 %v457, %v467
    %v541 = vmul.f32 %v456, %v472
    %v542 = vmul.f32 %v455, %v477
    %v543 = vmul.f32 %v454, %v482
    %v544 = vmul.f32 %v453, %v487
    %v545 = vmul.f32 %v452, %v492
    %v546 = vmul.f32 %v451, %v497
    %v547 = vmul.f32 %v450, %v502
    %v548 = vmul.f32 %v449, %v507
    %v549 = vmul.f32 %v448, %v512
    %v550 = vmul.f32 %v447, %v517
    %v551 = vmul.f32 %v446, %v522
    %v552 = vmul.f32 %v445, %v527
    %v553 = vmul.f32 %v444, %v532
    %v554 = vmul.f32 %v443, %v537
    %v555 = vrot.slane %v408, 1
    %v556 = vrot.slane %v409, 1
    %v557 = vrot.slane %v410, 1
    %v558 = vrot.slane %v411, 1
    %v559 = vrot.slane %v412, 1
    %v560 = vrot.slane %v413, 1
    %v561 = vrot.slane %v414, 1
    %v562 = vrot.slane %v415, 1
    %v563 = vrot.slane %v416, 1
    %v564 = vrot.slane %v417, 1
    %v565 = vrot.slane %v418, 1
    %v566 = vrot.slane %v419, 1
    %v567 = vrot.slane %v420, 1
    %v568 = vrot.slane %v421, 1
    %v569 = vrot.slane %v422, 1
    %v570 = vrot.slane %v423, 1
    %vm571 = vcmp.lt.s32.totalorder %v441, 7
    %v572 = vsel %vm571, %v569, %v570
    %v573 = vsel %vm571, %v568, %v569
    %v574 = vsel %vm571, %v567, %v568
    %v575 = vsel %vm571, %v566, %v567
    %v576 = vsel %vm571, %v565, %v566
    %v577 = vsel %vm571, %v564, %v565
    %v578 = vsel %vm571, %v563, %v564
    %v579 = vsel %vm571, %v562, %v563
    %v580 = vsel %vm571, %v561, %v562
    %v581 = vsel %vm571, %v560, %v561
    %v582 = vsel %vm571, %v559, %v560
    %v583 = vsel %vm571, %v558, %v559
    %v584 = vsel %vm571, %v557, %v558
    %v585 = vsel %vm571, %v556, %v557
    %v586 = vsel %vm571, %v555, %v556
    %v587 = vsel %vm571, %v570, %v555
    %588 = vset.pattern.permute.xlu0 1
    %589 = vperm.xlu0 %588, %v34
    %v590 = vpop.permute.xlu0 %589
    %592 = vset.pattern.permute.xlu0 1
    %593 = vperm.xlu0 %592, %v35
    %v594 = vpop.permute.xlu0 %593
    %596 = vset.pattern.permute.xlu0 1
    %597 = vperm.xlu0 %596, %v36
    %v598 = vpop.permute.xlu0 %597
    %600 = vset.pattern.permute.xlu0 1
    %601 = vperm.xlu0 %600, %v37
    %v602 = vpop.permute.xlu0 %601
    %604 = vset.pattern.permute.xlu0 1
    %605 = vperm.xlu0 %604, %v38
    %v606 = vpop.permute.xlu0 %605
    %608 = vset.pattern.permute.xlu0 1
    %609 = vperm.xlu0 %608, %v39
    %v610 = vpop.permute.xlu0 %609
    %612 = vset.pattern.permute.xlu0 1
    %613 = vperm.xlu0 %612, %v40
    %v614 = vpop.permute.xlu0 %613
    %616 = vset.pattern.permute.xlu0 1
    %617 = vperm.xlu0 %616, %v41
    %v618 = vpop.permute.xlu0 %617
    %620 = vset.pattern.permute.xlu0 1
    %621 = vperm.xlu0 %620, %v42
    %v622 = vpop.permute.xlu0 %621
    %624 = vset.pattern.permute.xlu0 1
    %625 = vperm.xlu0 %624, %v43
    %v626 = vpop.permute.xlu0 %625
    %628 = vset.pattern.permute.xlu0 1
    %629 = vperm.xlu0 %628, %v44
    %v630 = vpop.permute.xlu0 %629
    %632 = vset.pattern.permute.xlu0 1
    %633 = vperm.xlu0 %632, %v45
    %v634 = vpop.permute.xlu0 %633
    %636 = vset.pattern.permute.xlu0 1
    %637 = vperm.xlu0 %636, %v46
    %v638 = vpop.permute.xlu0 %637
    %640 = vset.pattern.permute.xlu0 1
    %641 = vperm.xlu0 %640, %v47
    %v642 = vpop.permute.xlu0 %641
    %644 = vset.pattern.permute.xlu0 1
    %645 = vperm.xlu0 %644, %v48
    %v646 = vpop.permute.xlu0 %645
    %648 = vset.pattern.permute.xlu0 1
    %649 = vperm.xlu0 %648, %v49
    %v650 = vpop.permute.xlu0 %649
    %v652 = vmul.f32 %v586, %v590
    %v653 = vmul.f32 %v585, %v594
    %v654 = vmul.f32 %v584, %v598
    %v655 = vmul.f32 %v583, %v602
    %v656 = vmul.f32 %v582, %v606
    %v657 = vmul.f32 %v581, %v610
    %v658 = vmul.f32 %v580, %v614
    %v659 = vmul.f32 %v579, %v618
    %v660 = vmul.f32 %v578, %v622
    %v661 = vmul.f32 %v577, %v626
    %v662 = vmul.f32 %v576, %v630
    %v663 = vmul.f32 %v575, %v634
    %v664 = vmul.f32 %v574, %v638
    %v665 = vmul.f32 %v573, %v642
    %v666 = vmul.f32 %v572, %v646
    %v667 = vmul.f32 %v587, %v650
    %684 = vrot.lane.b32.xlu0 %v408, 8
    %v685 = vpop.permute.xlu0 %684
    %686 = vrot.lane.b32.xlu0 %v409, 8
    %v687 = vpop.permute.xlu0 %686
    %688 = vrot.lane.b32.xlu0 %v410, 8
    %v689 = vpop.permute.xlu0 %688
    %690 = vrot.lane.b32.xlu0 %v411, 8
    %v691 = vpop.permute.xlu0 %690
    %692 = vrot.lane.b32.xlu0 %v412, 8
    %v693 = vpop.permute.xlu0 %692
    %694 = vrot.lane.b32.xlu0 %v413, 8
    %v695 = vpop.permute.xlu0 %694
    %696 = vrot.lane.b32.xlu0 %v414, 8
    %v697 = vpop.permute.xlu0 %696
    %698 = vrot.lane.b32.xlu0 %v415, 8
    %v699 = vpop.permute.xlu0 %698
    %700 = vrot.lane.b32.xlu0 %v416, 8
    %v701 = vpop.permute.xlu0 %700
    %702 = vrot.lane.b32.xlu0 %v417, 8
    %v703 = vpop.permute.xlu0 %702
    %704 = vrot.lane.b32.xlu0 %v418, 8
    %v705 = vpop.permute.xlu0 %704
    %706 = vrot.lane.b32.xlu0 %v419, 8
    %v707 = vpop.permute.xlu0 %706
    %708 = vrot.lane.b32.xlu0 %v420, 8
    %v709 = vpop.permute.xlu0 %708
    %710 = vrot.lane.b32.xlu0 %v421, 8
    %v711 = vpop.permute.xlu0 %710
    %712 = vrot.lane.b32.xlu0 %v422, 8
    %v713 = vpop.permute.xlu0 %712
    %714 = vrot.lane.b32.xlu0 %v423, 8
    %v715 = vpop.permute.xlu0 %714
    %748 = vrot.lane.b32.xlu0 %v652, 16
    %v749 = vpop.permute.xlu0 %748
    %750 = vrot.lane.b32.xlu0 %v653, 16
    %v751 = vpop.permute.xlu0 %750
    %752 = vrot.lane.b32.xlu0 %v654, 16
    %v753 = vpop.permute.xlu0 %752
    %754 = vrot.lane.b32.xlu0 %v655, 16
    %v755 = vpop.permute.xlu0 %754
    %756 = vrot.lane.b32.xlu0 %v656, 16
    %v757 = vpop.permute.xlu0 %756
    %758 = vrot.lane.b32.xlu0 %v657, 16
    %v759 = vpop.permute.xlu0 %758
    %760 = vrot.lane.b32.xlu0 %v658, 16
    %v761 = vpop.permute.xlu0 %760
    %762 = vrot.lane.b32.xlu0 %v659, 16
    %v763 = vpop.permute.xlu0 %762
    %764 = vrot.lane.b32.xlu0 %v660, 16
    %v765 = vpop.permute.xlu0 %764
    %766 = vrot.lane.b32.xlu0 %v661, 16
    %v767 = vpop.permute.xlu0 %766
    %768 = vrot.lane.b32.xlu0 %v662, 16
    %v769 = vpop.permute.xlu0 %768
    %770 = vrot.lane.b32.xlu0 %v663, 16
    %v771 = vpop.permute.xlu0 %770
    %772 = vrot.lane.b32.xlu0 %v664, 16
    %v773 = vpop.permute.xlu0 %772
    %774 = vrot.lane.b32.xlu0 %v665, 16
    %v775 = vpop.permute.xlu0 %774
    %776 = vrot.lane.b32.xlu0 %v666, 16
    %v777 = vpop.permute.xlu0 %776
    %778 = vrot.lane.b32.xlu0 %v667, 16
    %v779 = vpop.permute.xlu0 %778
    %vm796 = vcmask 64512
    %v797 = vsel %vm796, %v539, %v685
    %v798 = vsel %vm796, %v540, %v687
    %v799 = vsel %vm796, %v541, %v689
    %v800 = vsel %vm796, %v542, %v691
    %v801 = vsel %vm796, %v543, %v693
    %v802 = vsel %vm796, %v544, %v695
    %v803 = vsel %vm796, %v545, %v697
    %v804 = vsel %vm796, %v546, %v699
    %v805 = vsel %vm796, %v547, %v701
    %v806 = vsel %vm796, %v548, %v703
    %v807 = vsel %vm796, %v549, %v705
    %v808 = vsel %vm796, %v550, %v707
    %v809 = vsel %vm796, %v551, %v709
    %v810 = vsel %vm796, %v552, %v711
    %v811 = vsel %vm796, %v553, %v713
    %v812 = vsel %vm796, %v554, %v715
    %v813 = vsel %vm286, %v797, %v749
    %v814 = vsel %vm286, %v798, %v751
    %v815 = vsel %vm286, %v799, %v753
    %v816 = vsel %vm286, %v800, %v755
    %v817 = vsel %vm286, %v801, %v757
    %v818 = vsel %vm286, %v802, %v759
    %v819 = vsel %vm286, %v803, %v761
    %v820 = vsel %vm286, %v804, %v763
    %v821 = vsel %vm286, %v805, %v765
    %v822 = vsel %vm286, %v806, %v767
    %v823 = vsel %vm286, %v807, %v769
    %v824 = vsel %vm286, %v808, %v771
    %v825 = vsel %vm286, %v809, %v773
    %v826 = vsel %vm286, %v810, %v775
    %v827 = vsel %vm286, %v811, %v777
    %v828 = vsel %vm286, %v812, %v779
    %v829 = vpack.c.bf16 %v814, %v813
    %v830 = vpack.c.bf16 %v816, %v815
    %v831 = vpack.c.bf16 %v818, %v817
    %v832 = vpack.c.bf16 %v820, %v819
    %v833 = vpack.c.bf16 %v822, %v821
    %v834 = vpack.c.bf16 %v824, %v823
    %v835 = vpack.c.bf16 %v826, %v825
    %v836 = vpack.c.bf16 %v828, %v827
    %v837 = vld [vmem:[%s3] sm:$0xf]
    %v838 = vld [vmem:[%s3 + $0x4] sm:$0xf]
    %v839 = vld [vmem:[%s3 + $0x8] sm:$0xf]
    %v840 = vld [vmem:[%s7 + $0x2] sm:$0x1]
    %v841 = vlaneseq
    %v842 = vshrl.u32 %v841, 7
    %v843 = vsub.s32 0, %v842
    %v844 = vrot.slane %v840, %v843
    %v848 = vunpack.c.l.b16 %v837
    %v849 = vunpack.c.l.b16 %v838
    %v850 = vunpack.c.l.b16 %v839
    %v851 = vpack.c.b16 %v849, %v848
    %v852 = vpack.c.b16 %v850, %v850
    %vm854 = vcmask 195584
    %v856 = vsel %vm854, %v829, 0
    %v859 = vsel %vm854, %v830, 0
    %v862 = vsel %vm854, %v831, 0
    %v865 = vsel %vm854, %v832, 0
    %v868 = vsel %vm854, %v833, 0
    %v871 = vsel %vm854, %v834, 0
    %v874 = vsel %vm854, %v835, 0
    %v877 = vsel %vm854, %v836, 0
    %vm879 = vcmask 1043456
    %v881 = vsel %vm879, %v852, 0
    %883 = vmatprep.subr.bf16.mxu0 0
    %884 = vmatpush1.bf16.msra.mxu0 0
    %885 = vmatprep.subr.bf16.mxu0 0
    %886 = vmatpush1.bf16.msra.mxu0 0
    %887 = vmatprep.subr.bf16.mxu0 0
    %888 = vmatpush1.bf16.msra.mxu0 0
    %889 = vmatprep.subr.bf16.mxu0 0
    %890 = vmatpush1.bf16.msra.mxu0 0
    %891 = vmatprep.subr.bf16.mxu0 0
    %892 = vmatpush1.bf16.msra.mxu0 0
    %893 = vmatprep.subr.bf16.mxu0 0
    %894 = vmatpush1.bf16.msra.mxu0 0
    %895 = vmatprep.subr.bf16.mxu0 0
    %896 = vmatpush1.bf16.msra.mxu0 %v881
    %897 = vmatprep.subr.bf16.mxu0 0
    %898 = vmatpush1.bf16.msra.mxu0 %v851
    %899 = vmatprep.subr.bf16.mxu0 0
    %900 = vmatpush2.bf16.msra.mxu0 0
    %901 = vmatprep.subr.bf16.mxu0 0
    %902 = vmatpush2.bf16.msra.mxu0 0
    %903 = vmatprep.subr.bf16.mxu0 0
    %904 = vmatpush2.bf16.msra.mxu0 0
    %905 = vmatprep.subr.bf16.mxu0 0
    %906 = vmatpush2.bf16.msra.mxu0 0
    %907 = vmatprep.subr.bf16.mxu0 0
    %908 = vmatpush2.bf16.msra.mxu0 0
    %909 = vmatprep.subr.bf16.mxu0 0
    %910 = vmatpush2.bf16.msra.mxu0 0
    %911 = vmatprep.subr.bf16.mxu0 0
    %912 = vmatpush2.bf16.msra.mxu0 0
    %913 = vmatprep.subr.bf16.mxu0 0
    %914 = vmatpush2.bf16.msra.mxu0 0
    %915 = vmatprep.mubr.bf16.mxu0 0
    %916 = vmatmul.mubr.bf16.gmra.mxu0 %v856
    %v917 = vpop.f32.mrf.mxu0
    %v918 = vadd.f32 %v844, %v917
    %v919 = vpop.f32.mrf.mxu0
    %v920 = vpop.f32.mrf.mxu0
    %v921 = vadd.f32 %v844, %v920
    %v922 = vpop.f32.mrf.mxu0
    %923 = vmatprep.mubr.bf16.mxu0 0
    %924 = vmatmul.mubr.bf16.gmra.mxu0 %v859
    %v925 = vpop.f32.mrf.mxu0
    %v926 = vadd.f32 %v844, %v925
    %v927 = vpop.f32.mrf.mxu0
    %v928 = vpop.f32.mrf.mxu0
    %v929 = vadd.f32 %v844, %v928
    %v930 = vpop.f32.mrf.mxu0
    %931 = vmatprep.mubr.bf16.mxu0 0
    %932 = vmatmul.mubr.bf16.gmra.mxu0 %v862
    %v933 = vpop.f32.mrf.mxu0
    %v934 = vadd.f32 %v844, %v933
    %v935 = vpop.f32.mrf.mxu0
    %v936 = vpop.f32.mrf.mxu0
    %v937 = vadd.f32 %v844, %v936
    %v938 = vpop.f32.mrf.mxu0
    %939 = vmatprep.mubr.bf16.mxu0 0
    %940 = vmatmul.mubr.bf16.gmra.mxu0 %v865
    %v941 = vpop.f32.mrf.mxu0
    %v942 = vadd.f32 %v844, %v941
    %v943 = vpop.f32.mrf.mxu0
    %v944 = vpop.f32.mrf.mxu0
    %v945 = vadd.f32 %v844, %v944
    %v946 = vpop.f32.mrf.mxu0
    %947 = vmatprep.mubr.bf16.mxu0 0
    %948 = vmatmul.mubr.bf16.gmra.mxu0 %v868
    %v949 = vpop.f32.mrf.mxu0
    %v950 = vadd.f32 %v844, %v949
    %v951 = vpop.f32.mrf.mxu0
    %v952 = vpop.f32.mrf.mxu0
    %v953 = vadd.f32 %v844, %v952
    %v954 = vpop.f32.mrf.mxu0
    %955 = vmatprep.mubr.bf16.mxu0 0
    %956 = vmatmul.mubr.bf16.gmra.mxu0 %v871
    %v957 = vpop.f32.mrf.mxu0
    %v958 = vadd.f32 %v844, %v957
    %v959 = vpop.f32.mrf.mxu0
    %v960 = vpop.f32.mrf.mxu0
    %v961 = vadd.f32 %v844, %v960
    %v962 = vpop.f32.mrf.mxu0
    %963 = vmatprep.mubr.bf16.mxu0 0
    %964 = vmatmul.mubr.bf16.gmra.mxu0 %v874
    %v965 = vpop.f32.mrf.mxu0
    %v966 = vadd.f32 %v844, %v965
    %v967 = vpop.f32.mrf.mxu0
    %v968 = vpop.f32.mrf.mxu0
    %v969 = vadd.f32 %v844, %v968
    %v970 = vpop.f32.mrf.mxu0
    %971 = vmatprep.mubr.bf16.mxu0 0
    %972 = vmatmul.mubr.bf16.gmra.mxu0 %v877
    %v973 = vpop.f32.mrf.mxu0
    %v974 = vadd.f32 %v844, %v973
    %v975 = vpop.f32.mrf.mxu0
    %v976 = vpop.f32.mrf.mxu0
    %v977 = vadd.f32 %v844, %v976
    %v978 = vpop.f32.mrf.mxu0
    %979 = vdwg.mxu0
    %v980 = vmax.f32 %v918, 0.0
    %v981 = vmax.f32 %v921, 0.0
    %v982 = vmax.f32 %v926, 0.0
    %v983 = vmax.f32 %v929, 0.0
    %v984 = vmax.f32 %v934, 0.0
    %v985 = vmax.f32 %v937, 0.0
    %v986 = vmax.f32 %v942, 0.0
    %v987 = vmax.f32 %v945, 0.0
    %v988 = vmax.f32 %v950, 0.0
    %v989 = vmax.f32 %v953, 0.0
    %v990 = vmax.f32 %v958, 0.0
    %v991 = vmax.f32 %v961, 0.0
    %v992 = vmax.f32 %v966, 0.0
    %v993 = vmax.f32 %v969, 0.0
    %v994 = vmax.f32 %v974, 0.0
    %v995 = vmax.f32 %v977, 0.0
    %996 = vset.pattern.permute.xlu0 2
    %997 = vperm.xlu0 %996, %v34
    %v998 = vpop.permute.xlu0 %997
    %1000 = vset.pattern.permute.xlu0 2
    %1001 = vperm.xlu0 %1000, %v35
    %v1002 = vpop.permute.xlu0 %1001
    %1004 = vset.pattern.permute.xlu0 2
    %1005 = vperm.xlu0 %1004, %v36
    %v1006 = vpop.permute.xlu0 %1005
    %1008 = vset.pattern.permute.xlu0 2
    %1009 = vperm.xlu0 %1008, %v37
    %v1010 = vpop.permute.xlu0 %1009
    %1012 = vset.pattern.permute.xlu0 2
    %1013 = vperm.xlu0 %1012, %v38
    %v1014 = vpop.permute.xlu0 %1013
    %1016 = vset.pattern.permute.xlu0 2
    %1017 = vperm.xlu0 %1016, %v39
    %v1018 = vpop.permute.xlu0 %1017
    %1020 = vset.pattern.permute.xlu0 2
    %1021 = vperm.xlu0 %1020, %v40
    %v1022 = vpop.permute.xlu0 %1021
    %1024 = vset.pattern.permute.xlu0 2
    %1025 = vperm.xlu0 %1024, %v41
    %v1026 = vpop.permute.xlu0 %1025
    %1028 = vset.pattern.permute.xlu0 2
    %1029 = vperm.xlu0 %1028, %v42
    %v1030 = vpop.permute.xlu0 %1029
    %1032 = vset.pattern.permute.xlu0 2
    %1033 = vperm.xlu0 %1032, %v43
    %v1034 = vpop.permute.xlu0 %1033
    %1036 = vset.pattern.permute.xlu0 2
    %1037 = vperm.xlu0 %1036, %v44
    %v1038 = vpop.permute.xlu0 %1037
    %1040 = vset.pattern.permute.xlu0 2
    %1041 = vperm.xlu0 %1040, %v45
    %v1042 = vpop.permute.xlu0 %1041
    %1044 = vset.pattern.permute.xlu0 2
    %1045 = vperm.xlu0 %1044, %v46
    %v1046 = vpop.permute.xlu0 %1045
    %1048 = vset.pattern.permute.xlu0 2
    %1049 = vperm.xlu0 %1048, %v47
    %v1050 = vpop.permute.xlu0 %1049
    %1052 = vset.pattern.permute.xlu0 2
    %1053 = vperm.xlu0 %1052, %v48
    %v1054 = vpop.permute.xlu0 %1053
    %1056 = vset.pattern.permute.xlu0 2
    %1057 = vperm.xlu0 %1056, %v49
    %v1058 = vpop.permute.xlu0 %1057
    %v1060 = vmul.f32 %v995, %v998
    %v1061 = vmul.f32 %v980, %v1002
    %v1062 = vmul.f32 %v981, %v1006
    %v1063 = vmul.f32 %v982, %v1010
    %v1064 = vmul.f32 %v983, %v1014
    %v1065 = vmul.f32 %v984, %v1018
    %v1066 = vmul.f32 %v985, %v1022
    %v1067 = vmul.f32 %v986, %v1026
    %v1068 = vmul.f32 %v987, %v1030
    %v1069 = vmul.f32 %v988, %v1034
    %v1070 = vmul.f32 %v989, %v1038
    %v1071 = vmul.f32 %v990, %v1042
    %v1072 = vmul.f32 %v991, %v1046
    %v1073 = vmul.f32 %v992, %v1050
    %v1074 = vmul.f32 %v993, %v1054
    %v1075 = vmul.f32 %v994, %v1058
    %1076 = vset.pattern.permute.xlu0 3
    %1077 = vperm.xlu0 %1076, %v34
    %v1078 = vpop.permute.xlu0 %1077
    %1080 = vset.pattern.permute.xlu0 3
    %1081 = vperm.xlu0 %1080, %v35
    %v1082 = vpop.permute.xlu0 %1081
    %1084 = vset.pattern.permute.xlu0 3
    %1085 = vperm.xlu0 %1084, %v36
    %v1086 = vpop.permute.xlu0 %1085
    %1088 = vset.pattern.permute.xlu0 3
    %1089 = vperm.xlu0 %1088, %v37
    %v1090 = vpop.permute.xlu0 %1089
    %1092 = vset.pattern.permute.xlu0 3
    %1093 = vperm.xlu0 %1092, %v38
    %v1094 = vpop.permute.xlu0 %1093
    %1096 = vset.pattern.permute.xlu0 3
    %1097 = vperm.xlu0 %1096, %v39
    %v1098 = vpop.permute.xlu0 %1097
    %1100 = vset.pattern.permute.xlu0 3
    %1101 = vperm.xlu0 %1100, %v40
    %v1102 = vpop.permute.xlu0 %1101
    %1104 = vset.pattern.permute.xlu0 3
    %1105 = vperm.xlu0 %1104, %v41
    %v1106 = vpop.permute.xlu0 %1105
    %1108 = vset.pattern.permute.xlu0 3
    %1109 = vperm.xlu0 %1108, %v42
    %v1110 = vpop.permute.xlu0 %1109
    %1112 = vset.pattern.permute.xlu0 3
    %1113 = vperm.xlu0 %1112, %v43
    %v1114 = vpop.permute.xlu0 %1113
    %1116 = vset.pattern.permute.xlu0 3
    %1117 = vperm.xlu0 %1116, %v44
    %v1118 = vpop.permute.xlu0 %1117
    %1120 = vset.pattern.permute.xlu0 3
    %1121 = vperm.xlu0 %1120, %v45
    %v1122 = vpop.permute.xlu0 %1121
    %1124 = vset.pattern.permute.xlu0 3
    %1125 = vperm.xlu0 %1124, %v46
    %v1126 = vpop.permute.xlu0 %1125
    %1128 = vset.pattern.permute.xlu0 3
    %1129 = vperm.xlu0 %1128, %v47
    %v1130 = vpop.permute.xlu0 %1129
    %1132 = vset.pattern.permute.xlu0 3
    %1133 = vperm.xlu0 %1132, %v48
    %v1134 = vpop.permute.xlu0 %1133
    %1136 = vset.pattern.permute.xlu0 3
    %1137 = vperm.xlu0 %1136, %v49
    %v1138 = vpop.permute.xlu0 %1137
    %v1140 = vmul.f32 %v981, %v1078
    %v1141 = vmul.f32 %v982, %v1082
    %v1142 = vmul.f32 %v983, %v1086
    %v1143 = vmul.f32 %v984, %v1090
    %v1144 = vmul.f32 %v985, %v1094
    %v1145 = vmul.f32 %v986, %v1098
    %v1146 = vmul.f32 %v987, %v1102
    %v1147 = vmul.f32 %v988, %v1106
    %v1148 = vmul.f32 %v989, %v1110
    %v1149 = vmul.f32 %v990, %v1114
    %v1150 = vmul.f32 %v991, %v1118
    %v1151 = vmul.f32 %v992, %v1122
    %v1152 = vmul.f32 %v993, %v1126
    %v1153 = vmul.f32 %v994, %v1130
    %v1154 = vmul.f32 %v995, %v1134
    %v1155 = vmul.f32 %v980, %v1138
    %1172 = vrot.lane.b32.xlu0 %v980, 16
    %v1173 = vpop.permute.xlu0 %1172
    %1174 = vrot.lane.b32.xlu0 %v981, 16
    %v1175 = vpop.permute.xlu0 %1174
    %1176 = vrot.lane.b32.xlu0 %v982, 16
    %v1177 = vpop.permute.xlu0 %1176
    %1178 = vrot.lane.b32.xlu0 %v983, 16
    %v1179 = vpop.permute.xlu0 %1178
    %1180 = vrot.lane.b32.xlu0 %v984, 16
    %v1181 = vpop.permute.xlu0 %1180
    %1182 = vrot.lane.b32.xlu0 %v985, 16
    %v1183 = vpop.permute.xlu0 %1182
    %1184 = vrot.lane.b32.xlu0 %v986, 16
    %v1185 = vpop.permute.xlu0 %1184
    %1186 = vrot.lane.b32.xlu0 %v987, 16
    %v1187 = vpop.permute.xlu0 %1186
    %1188 = vrot.lane.b32.xlu0 %v988, 16
    %v1189 = vpop.permute.xlu0 %1188
    %1190 = vrot.lane.b32.xlu0 %v989, 16
    %v1191 = vpop.permute.xlu0 %1190
    %1192 = vrot.lane.b32.xlu0 %v990, 16
    %v1193 = vpop.permute.xlu0 %1192
    %1194 = vrot.lane.b32.xlu0 %v991, 16
    %v1195 = vpop.permute.xlu0 %1194
    %1196 = vrot.lane.b32.xlu0 %v992, 16
    %v1197 = vpop.permute.xlu0 %1196
    %1198 = vrot.lane.b32.xlu0 %v993, 16
    %v1199 = vpop.permute.xlu0 %1198
    %1200 = vrot.lane.b32.xlu0 %v994, 16
    %v1201 = vpop.permute.xlu0 %1200
    %1202 = vrot.lane.b32.xlu0 %v995, 16
    %v1203 = vpop.permute.xlu0 %1202
    %1236 = vrot.lane.b32.xlu0 %v1140, 32
    %v1237 = vpop.permute.xlu0 %1236
    %1238 = vrot.lane.b32.xlu0 %v1141, 32
    %v1239 = vpop.permute.xlu0 %1238
    %1240 = vrot.lane.b32.xlu0 %v1142, 32
    %v1241 = vpop.permute.xlu0 %1240
    %1242 = vrot.lane.b32.xlu0 %v1143, 32
    %v1243 = vpop.permute.xlu0 %1242
    %1244 = vrot.lane.b32.xlu0 %v1144, 32
    %v1245 = vpop.permute.xlu0 %1244
    %1246 = vrot.lane.b32.xlu0 %v1145, 32
    %v1247 = vpop.permute.xlu0 %1246
    %1248 = vrot.lane.b32.xlu0 %v1146, 32
    %v1249 = vpop.permute.xlu0 %1248
    %1250 = vrot.lane.b32.xlu0 %v1147, 32
    %v1251 = vpop.permute.xlu0 %1250
    %1252 = vrot.lane.b32.xlu0 %v1148, 32
    %v1253 = vpop.permute.xlu0 %1252
    %1254 = vrot.lane.b32.xlu0 %v1149, 32
    %v1255 = vpop.permute.xlu0 %1254
    %1256 = vrot.lane.b32.xlu0 %v1150, 32
    %v1257 = vpop.permute.xlu0 %1256
    %1258 = vrot.lane.b32.xlu0 %v1151, 32
    %v1259 = vpop.permute.xlu0 %1258
    %1260 = vrot.lane.b32.xlu0 %v1152, 32
    %v1261 = vpop.permute.xlu0 %1260
    %1262 = vrot.lane.b32.xlu0 %v1153, 32
    %v1263 = vpop.permute.xlu0 %1262
    %1264 = vrot.lane.b32.xlu0 %v1154, 32
    %v1265 = vpop.permute.xlu0 %1264
    %1266 = vrot.lane.b32.xlu0 %v1155, 32
    %v1267 = vpop.permute.xlu0 %1266
    %v1284 = vsel %vm286, %v1060, %v1173
    %v1285 = vsel %vm286, %v1061, %v1175
    %v1286 = vsel %vm286, %v1062, %v1177
    %v1287 = vsel %vm286, %v1063, %v1179
    %v1288 = vsel %vm286, %v1064, %v1181
    %v1289 = vsel %vm286, %v1065, %v1183
    %v1290 = vsel %vm286, %v1066, %v1185
    %v1291 = vsel %vm286, %v1067, %v1187
    %v1292 = vsel %vm286, %v1068, %v1189
    %v1293 = vsel %vm286, %v1069, %v1191
    %v1294 = vsel %vm286, %v1070, %v1193
    %v1295 = vsel %vm286, %v1071, %v1195
    %v1296 = vsel %vm286, %v1072, %v1197
    %v1297 = vsel %vm286, %v1073, %v1199
    %v1298 = vsel %vm286, %v1074, %v1201
    %v1299 = vsel %vm286, %v1075, %v1203
    %v1300 = vsel %vm127, %v1284, %v1237
    %v1301 = vsel %vm127, %v1285, %v1239
    %v1302 = vsel %vm127, %v1286, %v1241
    %v1303 = vsel %vm127, %v1287, %v1243
    %v1304 = vsel %vm127, %v1288, %v1245
    %v1305 = vsel %vm127, %v1289, %v1247
    %v1306 = vsel %vm127, %v1290, %v1249
    %v1307 = vsel %vm127, %v1291, %v1251
    %v1308 = vsel %vm127, %v1292, %v1253
    %v1309 = vsel %vm127, %v1293, %v1255
    %v1310 = vsel %vm127, %v1294, %v1257
    %v1311 = vsel %vm127, %v1295, %v1259
    %v1312 = vsel %vm127, %v1296, %v1261
    %v1313 = vsel %vm127, %v1297, %v1263
    %v1314 = vsel %vm127, %v1298, %v1265
    %v1315 = vsel %vm127, %v1299, %v1267
    %v1316 = vpack.c.bf16 %v1301, %v1300
    %v1317 = vpack.c.bf16 %v1303, %v1302
    %v1318 = vpack.c.bf16 %v1305, %v1304
    %v1319 = vpack.c.bf16 %v1307, %v1306
    %v1320 = vpack.c.bf16 %v1309, %v1308
    %v1321 = vpack.c.bf16 %v1311, %v1310
    %v1322 = vpack.c.bf16 %v1313, %v1312
    %v1323 = vpack.c.bf16 %v1315, %v1314
    %v1324 = vld [vmem:[%s4] sm:$0xf]
    %v1325 = vld [vmem:[%s4 + $0x4] sm:$0xf]
    %v1326 = vld [vmem:[%s4 + $0x8] sm:$0xf]
    %v1327 = vld [vmem:[%s4 + $0xc] sm:$0xf]
    %v1328 = vld [vmem:[%s4 + $0x10] sm:$0xf]
    %v1329 = vld [vmem:[%s4 + $0x14] sm:$0xf]
    %v1330 = vld [vmem:[%s7 + $0x3] sm:$0x1]
    %v1331 = vlaneseq
    %v1332 = vshrl.u32 %v1331, 7
    %v1333 = vsub.s32 0, %v1332
    %v1334 = vrot.slane %v1330, %v1333
    %v1341 = vunpack.c.l.b16 %v1324
    %v1342 = vunpack.c.l.b16 %v1325
    %v1343 = vunpack.c.l.b16 %v1326
    %v1344 = vunpack.c.l.b16 %v1327
    %v1345 = vunpack.c.l.b16 %v1328
    %v1346 = vunpack.c.l.b16 %v1329
    %v1347 = vpack.c.b16 %v1342, %v1341
    %v1348 = vpack.c.b16 %v1344, %v1343
    %v1349 = vpack.c.b16 %v1346, %v1345
    %vm1353 = vcmask 392192
    %v1355 = vsel %vm1353, %v1316, 0
    %v1358 = vsel %vm1353, %v1317, 0
    %v1361 = vsel %vm1353, %v1318, 0
    %v1364 = vsel %vm1353, %v1319, 0
    %v1367 = vsel %vm1353, %v1320, 0
    %v1370 = vsel %vm1353, %v1321, 0
    %v1373 = vsel %vm1353, %v1322, 0
    %v1376 = vsel %vm1353, %v1323, 0
    %1378 = vmatprep.subr.bf16.mxu0 0
    %1379 = vmatpush1.bf16.msra.mxu0 0
    %1380 = vmatprep.subr.bf16.mxu0 0
    %1381 = vmatpush1.bf16.msra.mxu0 0
    %1382 = vmatprep.subr.bf16.mxu0 0
    %1383 = vmatpush1.bf16.msra.mxu0 0
    %1384 = vmatprep.subr.bf16.mxu0 0
    %1385 = vmatpush1.bf16.msra.mxu0 0
    %1386 = vmatprep.subr.bf16.mxu0 0
    %1387 = vmatpush1.bf16.msra.mxu0 0
    %1388 = vmatprep.subr.bf16.mxu0 0
    %1389 = vmatpush1.bf16.msra.mxu0 %v1349
    %1390 = vmatprep.subr.bf16.mxu0 0
    %1391 = vmatpush1.bf16.msra.mxu0 %v1348
    %1392 = vmatprep.subr.bf16.mxu0 0
    %1393 = vmatpush1.bf16.msra.mxu0 %v1347
    %1394 = vmatprep.subr.bf16.mxu0 0
    %1395 = vmatpush2.bf16.msra.mxu0 0
    %1396 = vmatprep.subr.bf16.mxu0 0
    %1397 = vmatpush2.bf16.msra.mxu0 0
    %1398 = vmatprep.subr.bf16.mxu0 0
    %1399 = vmatpush2.bf16.msra.mxu0 0
    %1400 = vmatprep.subr.bf16.mxu0 0
    %1401 = vmatpush2.bf16.msra.mxu0 0
    %1402 = vmatprep.subr.bf16.mxu0 0
    %1403 = vmatpush2.bf16.msra.mxu0 0
    %1404 = vmatprep.subr.bf16.mxu0 0
    %1405 = vmatpush2.bf16.msra.mxu0 0
    %1406 = vmatprep.subr.bf16.mxu0 0
    %1407 = vmatpush2.bf16.msra.mxu0 0
    %1408 = vmatprep.subr.bf16.mxu0 0
    %1409 = vmatpush2.bf16.msra.mxu0 0
    %1410 = vmatprep.mubr.bf16.mxu0 0
    %1411 = vmatmul.mubr.bf16.gmra.mxu0 %v1355
    %v1412 = vpop.f32.mrf.mxu0
    %v1413 = vadd.f32 %v1334, %v1412
    %v1414 = vpop.f32.mrf.mxu0
    %v1415 = vpop.f32.mrf.mxu0
    %v1416 = vadd.f32 %v1334, %v1415
    %v1417 = vpop.f32.mrf.mxu0
    %1418 = vmatprep.mubr.bf16.mxu0 0
    %1419 = vmatmul.mubr.bf16.gmra.mxu0 %v1358
    %v1420 = vpop.f32.mrf.mxu0
    %v1421 = vadd.f32 %v1334, %v1420
    %v1422 = vpop.f32.mrf.mxu0
    %v1423 = vpop.f32.mrf.mxu0
    %v1424 = vadd.f32 %v1334, %v1423
    %v1425 = vpop.f32.mrf.mxu0
    %1426 = vmatprep.mubr.bf16.mxu0 0
    %1427 = vmatmul.mubr.bf16.gmra.mxu0 %v1361
    %v1428 = vpop.f32.mrf.mxu0
    %v1429 = vadd.f32 %v1334, %v1428
    %v1430 = vpop.f32.mrf.mxu0
    %v1431 = vpop.f32.mrf.mxu0
    %v1432 = vadd.f32 %v1334, %v1431
    %v1433 = vpop.f32.mrf.mxu0
    %1434 = vmatprep.mubr.bf16.mxu0 0
    %1435 = vmatmul.mubr.bf16.gmra.mxu0 %v1364
    %v1436 = vpop.f32.mrf.mxu0
    %v1437 = vadd.f32 %v1334, %v1436
    %v1438 = vpop.f32.mrf.mxu0
    %v1439 = vpop.f32.mrf.mxu0
    %v1440 = vadd.f32 %v1334, %v1439
    %v1441 = vpop.f32.mrf.mxu0
    %1442 = vmatprep.mubr.bf16.mxu0 0
    %1443 = vmatmul.mubr.bf16.gmra.mxu0 %v1367
    %v1444 = vpop.f32.mrf.mxu0
    %v1445 = vadd.f32 %v1334, %v1444
    %v1446 = vpop.f32.mrf.mxu0
    %v1447 = vpop.f32.mrf.mxu0
    %v1448 = vadd.f32 %v1334, %v1447
    %v1449 = vpop.f32.mrf.mxu0
    %1450 = vmatprep.mubr.bf16.mxu0 0
    %1451 = vmatmul.mubr.bf16.gmra.mxu0 %v1370
    %v1452 = vpop.f32.mrf.mxu0
    %v1453 = vadd.f32 %v1334, %v1452
    %v1454 = vpop.f32.mrf.mxu0
    %v1455 = vpop.f32.mrf.mxu0
    %v1456 = vadd.f32 %v1334, %v1455
    %v1457 = vpop.f32.mrf.mxu0
    %1458 = vmatprep.mubr.bf16.mxu0 0
    %1459 = vmatmul.mubr.bf16.gmra.mxu0 %v1373
    %v1460 = vpop.f32.mrf.mxu0
    %v1461 = vadd.f32 %v1334, %v1460
    %v1462 = vpop.f32.mrf.mxu0
    %v1463 = vpop.f32.mrf.mxu0
    %v1464 = vadd.f32 %v1334, %v1463
    %v1465 = vpop.f32.mrf.mxu0
    %1466 = vmatprep.mubr.bf16.mxu0 0
    %1467 = vmatmul.mubr.bf16.gmra.mxu0 %v1376
    %v1468 = vpop.f32.mrf.mxu0
    %v1469 = vadd.f32 %v1334, %v1468
    %v1470 = vpop.f32.mrf.mxu0
    %v1471 = vpop.f32.mrf.mxu0
    %v1472 = vadd.f32 %v1334, %v1471
    %v1473 = vpop.f32.mrf.mxu0
    %1474 = vdwg.mxu0
    %v1475 = vmax.f32 %v1413, 0.0
    %v1476 = vmax.f32 %v1416, 0.0
    %v1477 = vmax.f32 %v1421, 0.0
    %v1478 = vmax.f32 %v1424, 0.0
    %v1479 = vmax.f32 %v1429, 0.0
    %v1480 = vmax.f32 %v1432, 0.0
    %v1481 = vmax.f32 %v1437, 0.0
    %v1482 = vmax.f32 %v1440, 0.0
    %v1483 = vmax.f32 %v1445, 0.0
    %v1484 = vmax.f32 %v1448, 0.0
    %v1485 = vmax.f32 %v1453, 0.0
    %v1486 = vmax.f32 %v1456, 0.0
    %v1487 = vmax.f32 %v1461, 0.0
    %v1488 = vmax.f32 %v1464, 0.0
    %v1489 = vmax.f32 %v1469, 0.0
    %v1490 = vmax.f32 %v1472, 0.0
    %v1491 = vpack.c.bf16 %v1476, %v1475
    %v1492 = vpack.c.bf16 %v1478, %v1477
    %v1493 = vpack.c.bf16 %v1480, %v1479
    %v1494 = vpack.c.bf16 %v1482, %v1481
    %v1495 = vpack.c.bf16 %v1484, %v1483
    %v1496 = vpack.c.bf16 %v1486, %v1485
    %v1497 = vpack.c.bf16 %v1488, %v1487
    %v1498 = vpack.c.bf16 %v1490, %v1489
    %v1499 = vld [vmem:[%s5] sm:$0xf]
    %v1500 = vld [vmem:[%s5 + $0x4] sm:$0xf]
    %v1501 = vld [vmem:[%s7 + $0x4] sm:$0x1]
    %v1502 = vlaneseq
    %v1503 = vshrl.u32 %v1502, 7
    %v1504 = vsub.s32 0, %v1503
    %v1505 = vrot.slane %v1501, %v1504
    %v1508 = vunpack.c.l.b16 %v1499
    %v1509 = vunpack.c.l.b16 %v1500
    %v1510 = vpack.c.b16 %v1509, %v1508
    %v1513 = vsel %vm286, %v1491, 0
    %v1516 = vsel %vm286, %v1492, 0
    %v1519 = vsel %vm286, %v1493, 0
    %v1522 = vsel %vm286, %v1494, 0
    %v1525 = vsel %vm286, %v1495, 0
    %v1528 = vsel %vm286, %v1496, 0
    %v1531 = vsel %vm286, %v1497, 0
    %v1534 = vsel %vm286, %v1498, 0
    %1536 = vmatprep.subr.bf16.mxu0 0
    %1537 = vmatpush1.bf16.msra.mxu0 0
    %1538 = vmatprep.subr.bf16.mxu0 0
    %1539 = vmatpush1.bf16.msra.mxu0 0
    %1540 = vmatprep.subr.bf16.mxu0 0
    %1541 = vmatpush1.bf16.msra.mxu0 0
    %1542 = vmatprep.subr.bf16.mxu0 0
    %1543 = vmatpush1.bf16.msra.mxu0 0
    %1544 = vmatprep.subr.bf16.mxu0 0
    %1545 = vmatpush1.bf16.msra.mxu0 0
    %1546 = vmatprep.subr.bf16.mxu0 0
    %1547 = vmatpush1.bf16.msra.mxu0 0
    %1548 = vmatprep.subr.bf16.mxu0 0
    %1549 = vmatpush1.bf16.msra.mxu0 0
    %1550 = vmatprep.subr.bf16.mxu0 0
    %1551 = vmatpush1.bf16.msra.mxu0 %v1510
    %1552 = vmatprep.subr.bf16.mxu0 0
    %1553 = vmatpush2.bf16.msra.mxu0 0
    %1554 = vmatprep.subr.bf16.mxu0 0
    %1555 = vmatpush2.bf16.msra.mxu0 0
    %1556 = vmatprep.subr.bf16.mxu0 0
    %1557 = vmatpush2.bf16.msra.mxu0 0
    %1558 = vmatprep.subr.bf16.mxu0 0
    %1559 = vmatpush2.bf16.msra.mxu0 0
    %1560 = vmatprep.subr.bf16.mxu0 0
    %1561 = vmatpush2.bf16.msra.mxu0 0
    %1562 = vmatprep.subr.bf16.mxu0 0
    %1563 = vmatpush2.bf16.msra.mxu0 0
    %1564 = vmatprep.subr.bf16.mxu0 0
    %1565 = vmatpush2.bf16.msra.mxu0 0
    %1566 = vmatprep.subr.bf16.mxu0 0
    %1567 = vmatpush2.bf16.msra.mxu0 0
    %1568 = vmatprep.mubr.bf16.mxu0 0
    %1569 = vmatmul.mubr.bf16.gmra.mxu0 %v1513
    %v1570 = vpop.f32.mrf.mxu0
    %v1571 = vadd.f32 %v1505, %v1570
    %v1572 = vpop.f32.mrf.mxu0
    %v1573 = vpop.f32.mrf.mxu0
    %v1574 = vadd.f32 %v1505, %v1573
    %v1575 = vpop.f32.mrf.mxu0
    %1576 = vmatprep.mubr.bf16.mxu0 0
    %1577 = vmatmul.mubr.bf16.gmra.mxu0 %v1516
    %v1578 = vpop.f32.mrf.mxu0
    %v1579 = vadd.f32 %v1505, %v1578
    %v1580 = vpop.f32.mrf.mxu0
    %v1581 = vpop.f32.mrf.mxu0
    %v1582 = vadd.f32 %v1505, %v1581
    %v1583 = vpop.f32.mrf.mxu0
    %1584 = vmatprep.mubr.bf16.mxu0 0
    %1585 = vmatmul.mubr.bf16.gmra.mxu0 %v1519
    %v1586 = vpop.f32.mrf.mxu0
    %v1587 = vadd.f32 %v1505, %v1586
    %v1588 = vpop.f32.mrf.mxu0
    %v1589 = vpop.f32.mrf.mxu0
    %v1590 = vadd.f32 %v1505, %v1589
    %v1591 = vpop.f32.mrf.mxu0
    %1592 = vmatprep.mubr.bf16.mxu0 0
    %1593 = vmatmul.mubr.bf16.gmra.mxu0 %v1522
    %v1594 = vpop.f32.mrf.mxu0
    %v1595 = vadd.f32 %v1505, %v1594
    %v1596 = vpop.f32.mrf.mxu0
    %v1597 = vpop.f32.mrf.mxu0
    %v1598 = vadd.f32 %v1505, %v1597
    %v1599 = vpop.f32.mrf.mxu0
    %1600 = vmatprep.mubr.bf16.mxu0 0
    %1601 = vmatmul.mubr.bf16.gmra.mxu0 %v1525
    %v1602 = vpop.f32.mrf.mxu0
    %v1603 = vadd.f32 %v1505, %v1602
    %v1604 = vpop.f32.mrf.mxu0
    %v1605 = vpop.f32.mrf.mxu0
    %v1606 = vadd.f32 %v1505, %v1605
    %v1607 = vpop.f32.mrf.mxu0
    %1608 = vmatprep.mubr.bf16.mxu0 0
    %1609 = vmatmul.mubr.bf16.gmra.mxu0 %v1528
    %v1610 = vpop.f32.mrf.mxu0
    %v1611 = vadd.f32 %v1505, %v1610
    %v1612 = vpop.f32.mrf.mxu0
    %v1613 = vpop.f32.mrf.mxu0
    %v1614 = vadd.f32 %v1505, %v1613
    %v1615 = vpop.f32.mrf.mxu0
    %1616 = vmatprep.mubr.bf16.mxu0 0
    %1617 = vmatmul.mubr.bf16.gmra.mxu0 %v1531
    %v1618 = vpop.f32.mrf.mxu0
    %v1619 = vadd.f32 %v1505, %v1618
    %v1620 = vpop.f32.mrf.mxu0
    %v1621 = vpop.f32.mrf.mxu0
    %v1622 = vadd.f32 %v1505, %v1621
    %v1623 = vpop.f32.mrf.mxu0
    %1624 = vmatprep.mubr.bf16.mxu0 0
    %1625 = vmatmul.mubr.bf16.gmra.mxu0 %v1534
    %v1626 = vpop.f32.mrf.mxu0
    %v1627 = vadd.f32 %v1505, %v1626
    %v1628 = vpop.f32.mrf.mxu0
    %v1629 = vpop.f32.mrf.mxu0
    %v1630 = vadd.f32 %v1505, %v1629
    %v1631 = vpop.f32.mrf.mxu0
    %1632 = vdwg.mxu0
    %v1633 = vld [vmem:[%s6] sm:$0xf]
    %v1634 = vld [vmem:[%s6 + $0x4] sm:$0xf]
    %v1635 = vld [vmem:[%s6 + $0x8] sm:$0xf]
    %v1636 = vld [vmem:[%s6 + $0xc] sm:$0xf]
    %v1641 = vunpack.c.l.b16 %v1633
    %v1642 = vunpack.c.l.b16 %v1634
    %v1643 = vunpack.c.l.b16 %v1635
    %v1644 = vunpack.c.l.b16 %v1636
    %v1645 = vpack.c.b16 %v1642, %v1641
    %v1646 = vpack.c.b16 %v1644, %v1643
    %1649 = vmatprep.subr.bf16.mxu0 0
    %1650 = vmatpush1.bf16.msra.mxu0 0
    %1651 = vmatprep.subr.bf16.mxu0 0
    %1652 = vmatpush1.bf16.msra.mxu0 0
    %1653 = vmatprep.subr.bf16.mxu0 0
    %1654 = vmatpush1.bf16.msra.mxu0 0
    %1655 = vmatprep.subr.bf16.mxu0 0
    %1656 = vmatpush1.bf16.msra.mxu0 0
    %1657 = vmatprep.subr.bf16.mxu0 0
    %1658 = vmatpush1.bf16.msra.mxu0 0
    %1659 = vmatprep.subr.bf16.mxu0 0
    %1660 = vmatpush1.bf16.msra.mxu0 0
    %1661 = vmatprep.subr.bf16.mxu0 0
    %1662 = vmatpush1.bf16.msra.mxu0 %v1646
    %1663 = vmatprep.subr.bf16.mxu0 0
    %1664 = vmatpush1.bf16.msra.mxu0 %v1645
    %1665 = vmatprep.subr.bf16.mxu0 0
    %1666 = vmatpush2.bf16.msra.mxu0 0
    %1667 = vmatprep.subr.bf16.mxu0 0
    %1668 = vmatpush2.bf16.msra.mxu0 0
    %1669 = vmatprep.subr.bf16.mxu0 0
    %1670 = vmatpush2.bf16.msra.mxu0 0
    %1671 = vmatprep.subr.bf16.mxu0 0
    %1672 = vmatpush2.bf16.msra.mxu0 0
    %1673 = vmatprep.subr.bf16.mxu0 0
    %1674 = vmatpush2.bf16.msra.mxu0 0
    %1675 = vmatprep.subr.bf16.mxu0 0
    %1676 = vmatpush2.bf16.msra.mxu0 0
    %1677 = vmatprep.subr.bf16.mxu0 0
    %1678 = vmatpush2.bf16.msra.mxu0 0
    %1679 = vmatprep.subr.bf16.mxu0 0
    %1680 = vmatpush2.bf16.msra.mxu0 0
    %1681 = vmatprep.mubr.bf16.mxu0 0
    %1682 = vmatmul.mubr.bf16.gmra.mxu0 %v129
    %v1683 = vpop.f32.mrf.mxu0
    %v1684 = vadd.f32 0.0, %v1683
    %v1685 = vpop.f32.mrf.mxu0
    %v1686 = vpop.f32.mrf.mxu0
    %v1687 = vadd.f32 0.0, %v1686
    %v1688 = vpop.f32.mrf.mxu0
    %1689 = vmatprep.mubr.bf16.mxu0 0
    %1690 = vmatmul.mubr.bf16.gmra.mxu0 %v132
    %v1691 = vpop.f32.mrf.mxu0
    %v1692 = vadd.f32 0.0, %v1691
    %v1693 = vpop.f32.mrf.mxu0
    %v1694 = vpop.f32.mrf.mxu0
    %v1695 = vadd.f32 0.0, %v1694
    %v1696 = vpop.f32.mrf.mxu0
    %1697 = vmatprep.mubr.bf16.mxu0 0
    %1698 = vmatmul.mubr.bf16.gmra.mxu0 %v135
    %v1699 = vpop.f32.mrf.mxu0
    %v1700 = vadd.f32 0.0, %v1699
    %v1701 = vpop.f32.mrf.mxu0
    %v1702 = vpop.f32.mrf.mxu0
    %v1703 = vadd.f32 0.0, %v1702
    %v1704 = vpop.f32.mrf.mxu0
    %1705 = vmatprep.mubr.bf16.mxu0 0
    %1706 = vmatmul.mubr.bf16.gmra.mxu0 %v138
    %v1707 = vpop.f32.mrf.mxu0
    %v1708 = vadd.f32 0.0, %v1707
    %v1709 = vpop.f32.mrf.mxu0
    %v1710 = vpop.f32.mrf.mxu0
    %v1711 = vadd.f32 0.0, %v1710
    %v1712 = vpop.f32.mrf.mxu0
    %1713 = vmatprep.mubr.bf16.mxu0 0
    %1714 = vmatmul.mubr.bf16.gmra.mxu0 %v141
    %v1715 = vpop.f32.mrf.mxu0
    %v1716 = vadd.f32 0.0, %v1715
    %v1717 = vpop.f32.mrf.mxu0
    %v1718 = vpop.f32.mrf.mxu0
    %v1719 = vadd.f32 0.0, %v1718
    %v1720 = vpop.f32.mrf.mxu0
    %1721 = vmatprep.mubr.bf16.mxu0 0
    %1722 = vmatmul.mubr.bf16.gmra.mxu0 %v144
    %v1723 = vpop.f32.mrf.mxu0
    %v1724 = vadd.f32 0.0, %v1723
    %v1725 = vpop.f32.mrf.mxu0
    %v1726 = vpop.f32.mrf.mxu0
    %v1727 = vadd.f32 0.0, %v1726
    %v1728 = vpop.f32.mrf.mxu0
    %1729 = vmatprep.mubr.bf16.mxu0 0
    %1730 = vmatmul.mubr.bf16.gmra.mxu0 %v147
    %v1731 = vpop.f32.mrf.mxu0
    %v1732 = vadd.f32 0.0, %v1731
    %v1733 = vpop.f32.mrf.mxu0
    %v1734 = vpop.f32.mrf.mxu0
    %v1735 = vadd.f32 0.0, %v1734
    %v1736 = vpop.f32.mrf.mxu0
    %1737 = vmatprep.mubr.bf16.mxu0 0
    %1738 = vmatmul.mubr.bf16.gmra.mxu0 %v150
    %v1739 = vpop.f32.mrf.mxu0
    %v1740 = vadd.f32 0.0, %v1739
    %v1741 = vpop.f32.mrf.mxu0
    %v1742 = vpop.f32.mrf.mxu0
    %v1743 = vadd.f32 0.0, %v1742
    %v1744 = vpop.f32.mrf.mxu0
    %1745 = vdwg.mxu0
    %v1746 = vadd.f32 %v1571, %v1684
    %v1747 = vadd.f32 %v1574, %v1687
    %v1748 = vadd.f32 %v1579, %v1692
    %v1749 = vadd.f32 %v1582, %v1695
    %v1750 = vadd.f32 %v1587, %v1700
    %v1751 = vadd.f32 %v1590, %v1703
    %v1752 = vadd.f32 %v1595, %v1708
    %v1753 = vadd.f32 %v1598, %v1711
    %v1754 = vadd.f32 %v1603, %v1716
    %v1755 = vadd.f32 %v1606, %v1719
    %v1756 = vadd.f32 %v1611, %v1724
    %v1757 = vadd.f32 %v1614, %v1727
    %v1758 = vadd.f32 %v1619, %v1732
    %v1759 = vadd.f32 %v1622, %v1735
    %v1760 = vadd.f32 %v1627, %v1740
    %v1761 = vadd.f32 %v1630, %v1743
    %v1762 = vmax.f32 %v1746, 0.0
    %v1763 = vmax.f32 %v1747, 0.0
    %v1764 = vmax.f32 %v1748, 0.0
    %v1765 = vmax.f32 %v1749, 0.0
    %v1766 = vmax.f32 %v1750, 0.0
    %v1767 = vmax.f32 %v1751, 0.0
    %v1768 = vmax.f32 %v1752, 0.0
    %v1769 = vmax.f32 %v1753, 0.0
    %v1770 = vmax.f32 %v1754, 0.0
    %v1771 = vmax.f32 %v1755, 0.0
    %v1772 = vmax.f32 %v1756, 0.0
    %v1773 = vmax.f32 %v1757, 0.0
    %v1774 = vmax.f32 %v1758, 0.0
    %v1775 = vmax.f32 %v1759, 0.0
    %v1776 = vmax.f32 %v1760, 0.0
    %v1777 = vmax.f32 %v1761, 0.0
    %v1778 = vpack.c.bf16 %v1763, %v1762
    %v1779 = vpack.c.bf16 %v1765, %v1764
    %v1780 = vpack.c.bf16 %v1767, %v1766
    %v1781 = vpack.c.bf16 %v1769, %v1768
    %v1782 = vpack.c.bf16 %v1771, %v1770
    %v1783 = vpack.c.bf16 %v1773, %v1772
    %v1784 = vpack.c.bf16 %v1775, %v1774
    %v1785 = vpack.c.bf16 %v1777, %v1776
    %v1794 = vunpack.c.l.b16 %v1778
    %v1795 = vunpack.c.h.b16 %v1778
    %v1796 = vunpack.c.l.b16 %v1779
    %v1797 = vunpack.c.h.b16 %v1779
    %v1798 = vunpack.c.l.b16 %v1780
    %v1799 = vunpack.c.h.b16 %v1780
    %v1800 = vunpack.c.l.b16 %v1781
    %v1801 = vunpack.c.h.b16 %v1781
    %v1802 = vunpack.c.l.b16 %v1782
    %v1803 = vunpack.c.h.b16 %v1782
    %v1804 = vunpack.c.l.b16 %v1783
    %v1805 = vunpack.c.h.b16 %v1783
    %v1806 = vunpack.c.l.b16 %v1784
    %v1807 = vunpack.c.h.b16 %v1784
    %v1808 = vunpack.c.l.b16 %v1785
    %v1809 = vunpack.c.h.b16 %v1785
    %v1810 = vpack.c.b16 %v1794, %v1794
    %v1811 = vpack.c.b16 %v1795, %v1795
    %v1812 = vpack.c.b16 %v1796, %v1796
    %v1813 = vpack.c.b16 %v1797, %v1797
    %v1814 = vpack.c.b16 %v1798, %v1798
    %v1815 = vpack.c.b16 %v1799, %v1799
    %v1816 = vpack.c.b16 %v1800, %v1800
    %v1817 = vpack.c.b16 %v1801, %v1801
    %v1818 = vpack.c.b16 %v1802, %v1802
    %v1819 = vpack.c.b16 %v1803, %v1803
    %v1820 = vpack.c.b16 %v1804, %v1804
    %v1821 = vpack.c.b16 %v1805, %v1805
    %v1822 = vpack.c.b16 %v1806, %v1806
    %v1823 = vpack.c.b16 %v1807, %v1807
    %v1824 = vpack.c.b16 %v1808, %v1808
    %v1825 = vpack.c.b16 %v1809, %v1809
    %1842 = vst [vmem:[#allocation2] sm:$0xf] %v1810
    %1843 = vst [vmem:[#allocation2 + $0x4] sm:$0xf] %v1811
    %1844 = vst [vmem:[#allocation2 + $0x8] sm:$0xf] %v1812
    %1845 = vst [vmem:[#allocation2 + $0xc] sm:$0xf] %v1813
    %1846 = vst [vmem:[#allocation2 + $0x10] sm:$0xf] %v1814
    %1847 = vst [vmem:[#allocation2 + $0x14] sm:$0xf] %v1815
    %1848 = vst [vmem:[#allocation2 + $0x18] sm:$0xf] %v1816
    %1849 = vst [vmem:[#allocation2 + $0x1c] sm:$0xf] %v1817
    %1850 = vst [vmem:[#allocation2 + $0x20] sm:$0xf] %v1818
    %1851 = vst [vmem:[#allocation2 + $0x24] sm:$0xf] %v1819
    %1852 = vst [vmem:[#allocation2 + $0x28] sm:$0xf] %v1820
    %1853 = vst [vmem:[#allocation2 + $0x2c] sm:$0xf] %v1821
    %1854 = vst [vmem:[#allocation2 + $0x30] sm:$0xf] %v1822
    %1855 = vst [vmem:[#allocation2 + $0x34] sm:$0xf] %v1823
    %1856 = vst [vmem:[#allocation2 + $0x38] sm:$0xf] %v1824
    %1857 = vst [vmem:[#allocation2 + $0x3c] sm:$0xf] %v1825
    // Predicated region
    $region38: #{tpu_custom_call.1} parent=1 // pred_check
      _
    $region39: #{tpu_custom_call.1} parent=1 // pred_check_branch
      %1859 = sbr.rel (0) target = $region41
    $region40: #{tpu_custom_call.1} parent=1 // pred_region
      %s1861 = ssub.s32 1024, 1024
      %1862 = vsyncadd [#allocation3], %s1861
      %s1863 = sshll.u32 [#allocation2], 4
      %s1864 = int_to_ptr.vmem [resolvable:$true] %s1863
      %1869 = dma.vmem_to_hbm [thread:$0]  %s1864, 1024, %s9, [#allocation3], 64, 64, 4
    $region41: #{tpu_custom_call.1} parent=1 // pred_fallthru
      _
    // Predicated region
    $region42: #{tpu_custom_call.1} parent=1 // pred_check
      _
    $region43: #{tpu_custom_call.1} parent=1 // pred_check_branch
      %1871 = sbr.rel (0) target = $region45
    $region44: #{tpu_custom_call.1} parent=1 // pred_region
      %1872 = dma.done [#allocation3], 1024
    $region45: #{tpu_custom_call.1} parent=1 // pred_fallthru
      _
    %1873 = vsyncpa [#allocation3], 1

</llo_original>
